<compile_context>
chip_gen: v7x
topology: tpu7x:2x2x1
jax: 0.10.0
libtpu: 0.0.40
codegen_flags: <defaults>
</compile_context>

<pallas_src>
import functools

import jax
import jax.numpy as jnp
from jax.experimental import pallas as pl
from jax.experimental.pallas import tpu as pltpu


def _encoder_layer_kernel(x_ref,
                          wq_ref, wk_ref, wv_ref,
                          bq_ref, bk_ref, bv_ref,
                          wo_ref, bo_ref,
                          w1_ref, b1_ref,
                          w2_ref, b2_ref,
                          o_ref,
                          *, nhead, head_dim):
    # x block: (Bt, L, E) — a block of batch elements, batch-major.
    Bt, L, E = x_ref.shape
    M = Bt * L
    x = x_ref[...].reshape(M, E)                   # fat-M slab, row = b*L + l

    scale = 1.0 / (head_dim ** 0.5)

    # ---- fused fat-M QKV projections (PyTorch in_proj split into q/k/v) ----
    q = (jnp.dot(x, wq_ref[...], preferred_element_type=jnp.float32)
         + bq_ref[...]) * scale                    # scale applied once to full q
    k = jnp.dot(x, wk_ref[...], preferred_element_type=jnp.float32) + bk_ref[...]
    v = jnp.dot(x, wv_ref[...], preferred_element_type=jnp.float32) + bv_ref[...]

    # ---- multi-head attention: batched over the Bt batch elements per head,
    #      output projection accumulated per head (no lane-axis concatenate) ----
    attn = jnp.zeros((M, E), jnp.float32)
    for h in range(nhead):                         # static, small head loop
        lo = h * head_dim
        hi = lo + head_dim
        qh = q[:, lo:hi].reshape(Bt, L, head_dim)
        kh = k[:, lo:hi].reshape(Bt, L, head_dim)
        vh = v[:, lo:hi].reshape(Bt, L, head_dim)
        s = jnp.einsum('bld,bmd->blm', qh, kh,
                       preferred_element_type=jnp.float32)      # (Bt, L, L)
        s = s - jnp.max(s, axis=-1, keepdims=True)
        p = jnp.exp(s)
        p = p * pl.reciprocal(jnp.sum(p, axis=-1, keepdims=True), approx=True)
        ah = jnp.einsum('blm,bmd->bld', p, vh,
                        preferred_element_type=jnp.float32)     # (Bt, L, Dh)
        # accumulate this head's slice of the output projection
        attn = attn + jnp.dot(ah.reshape(M, head_dim), wo_ref[lo:hi, :],
                              preferred_element_type=jnp.float32)
    attn = attn + bo_ref[...]

    # ---- residual (dropout1 = identity in eval) ----
    src = x + attn                                 # (M, E)

    # ---- feed-forward: linear1 -> relu -> linear2, + residual ----
    h1 = jnp.dot(src, w1_ref[...], preferred_element_type=jnp.float32) + b1_ref[...]
    h1 = jnp.maximum(h1, 0.0)                      # relu
    ff = jnp.dot(h1, w2_ref[...], preferred_element_type=jnp.float32) + b2_ref[...]
    out = src + ff

    o_ref[...] = out.reshape(Bt, L, E).astype(o_ref.dtype)


def transformer_encoder_layer_no_ln(src, params, *, nhead, batch_block=None):
    """src: (L, N, E) float32, PyTorch MultiheadAttention convention."""
    L, N, E = src.shape
    head_dim = E // nhead
    F_dim = params["w1"].shape[1]

    # Batch block per grid step: whole batch by default (fat-M matmuls).
    # For larger N (e.g. on v7x) pick batch_block = N // 2 so the "parallel"
    # grid axis has >= 2 steps and both TensorCores get work.
    Bt = batch_block or N
    assert N % Bt == 0, "batch must be divisible by batch_block"

    x = jnp.transpose(src, (1, 0, 2))              # (N, L, E) batch-major

    rep = lambda shape: pl.BlockSpec(shape, lambda b: (0,) * len(shape))
    kernel = functools.partial(_encoder_layer_kernel, nhead=nhead, head_dim=head_dim)

    # Advisory cost estimate for the XLA scheduler.
    flops = int(2 * N * L * (4 * E * E + 2 * E * F_dim)
                + 4 * N * nhead * L * L * head_dim)
    transcendentals = int(N * nhead * L * L)
    bytes_accessed = int(4 * (2 * N * L * E + 4 * E * E + 2 * E * F_dim
                              + 4 * E + F_dim))

    out = pl.pallas_call(
        kernel,
        out_shape=jax.ShapeDtypeStruct((N, L, E), jnp.float32),
        grid_spec=pltpu.PrefetchScalarGridSpec(
            num_scalar_prefetch=0,
            grid=(N // Bt,),
            in_specs=[
                pl.BlockSpec((Bt, L, E), lambda b: (b, 0, 0)),   # x (batch block)
                rep((E, E)), rep((E, E)), rep((E, E)),           # wq, wk, wv
                rep((1, E)), rep((1, E)), rep((1, E)),           # bq, bk, bv
                rep((E, E)), rep((1, E)),                        # wo, bo
                rep((E, F_dim)), rep((1, F_dim)),                # w1, b1
                rep((F_dim, E)), rep((1, E)),                    # w2, b2
            ],
            out_specs=pl.BlockSpec((Bt, L, E), lambda b: (b, 0, 0)),
        ),
        compiler_params=pltpu.CompilerParams(dimension_semantics=("parallel",)),
        cost_estimate=pl.CostEstimate(flops=flops,
                                      transcendentals=transcendentals,
                                      bytes_accessed=bytes_accessed),
    )(x,
      params["wq"], params["wk"], params["wv"],
      params["bq"], params["bk"], params["bv"],
      params["wo"], params["bo"],
      params["w1"], params["b1"],
      params["w2"], params["b2"])

    return jnp.transpose(out, (1, 0, 2))           # back to (L, N, E)


def _reference_forward(src, params, *, nhead):
    """Pure-JAX reference mirroring PyTorch semantics (eval mode)."""
    L, N, E = src.shape
    head_dim = E // nhead
    scale = 1.0 / (head_dim ** 0.5)
    x = jnp.transpose(src, (1, 0, 2))              # (N, L, E)
    q = x @ params["wq"] + params["bq"]
    k = x @ params["wk"] + params["bk"]
    v = x @ params["wv"] + params["bv"]
    q = q.reshape(N, L, nhead, head_dim).transpose(0, 2, 1, 3) * scale
    k = k.reshape(N, L, nhead, head_dim).transpose(0, 2, 1, 3)
    v = v.reshape(N, L, nhead, head_dim).transpose(0, 2, 1, 3)
    s = jnp.einsum("bhld,bhmd->bhlm", q, k)
    p = jax.nn.softmax(s, axis=-1)
    a = jnp.einsum("bhlm,bhmd->bhld", p, v).transpose(0, 2, 1, 3).reshape(N, L, E)
    a = a @ params["wo"] + params["bo"]
    src2 = x + a
    h = jnp.maximum(src2 @ params["w1"] + params["b1"], 0.0)
    out = src2 + (h @ params["w2"] + params["b2"])
    return jnp.transpose(out, (1, 0, 2))


def _init_params(key, d_model, nhead, dim_feedforward):
    ks = jax.random.split(key, 10)
    scale = 0.05
    # Weights stored pre-transposed so the kernel computes y = x @ W + b.
    return {
        "wq": scale * jax.random.normal(ks[0], (d_model, d_model), jnp.float32),
        "wk": scale * jax.random.normal(ks[1], (d_model, d_model), jnp.float32),
        "wv": scale * jax.random.normal(ks[2], (d_model, d_model), jnp.float32),
        "bq": scale * jax.random.normal(ks[3], (1, d_model), jnp.float32),
        "bk": scale * jax.random.normal(ks[4], (1, d_model), jnp.float32),
        "bv": scale * jax.random.normal(ks[5], (1, d_model), jnp.float32),
        "wo": scale * jax.random.normal(ks[6], (d_model, d_model), jnp.float32),
        "bo": jnp.zeros((1, d_model), jnp.float32),
        "w1": scale * jax.random.normal(ks[7], (d_model, dim_feedforward), jnp.float32),
        "b1": scale * jax.random.normal(ks[8], (1, dim_feedforward), jnp.float32),
        "w2": scale * jax.random.normal(ks[9], (dim_feedforward, d_model), jnp.float32),
        "b2": jnp.zeros((1, d_model), jnp.float32),
    }


if __name__ == "__main__":
    d_model = 32
    nhead = 4
    dim_feedforward = 64
    seq_len = 8
    batch = 2

    key = jax.random.PRNGKey(0)
    k_src, k_par = jax.random.split(key)
    src = jax.random.normal(k_src, (seq_len, batch, d_model), jnp.float32)
    params = _init_params(k_par, d_model, nhead, dim_feedforward)

    out = transformer_encoder_layer_no_ln(src, params, nhead=nhead)
    out = jax.block_until_ready(out)

    ref = _reference_forward(src, params, nhead=nhead)
    assert out.shape == (seq_len, batch, d_model)
    # approx reciprocal in the softmax trades a few ULPs -> 1e-3 tolerance
    assert jnp.allclose(out, ref, atol=1e-3, rtol=1e-3), \
        float(jnp.max(jnp.abs(out - ref)))

    print("KERNEL_OK")
</pallas_src>

<mosaic_0001>
module attributes {stable_mosaic.version = 11 : i64} {
  func.func @_encoder_layer_kernel(%arg0: i32, %arg1: memref<2x8x32xf32, #tpu.memory_space<vmem>>, %arg2: memref<32x32xf32, #tpu.memory_space<vmem>>, %arg3: memref<32x32xf32, #tpu.memory_space<vmem>>, %arg4: memref<32x32xf32, #tpu.memory_space<vmem>>, %arg5: memref<1x32xf32, #tpu.memory_space<vmem>>, %arg6: memref<1x32xf32, #tpu.memory_space<vmem>>, %arg7: memref<1x32xf32, #tpu.memory_space<vmem>>, %arg8: memref<32x32xf32, #tpu.memory_space<vmem>>, %arg9: memref<1x32xf32, #tpu.memory_space<vmem>>, %arg10: memref<32x64xf32, #tpu.memory_space<vmem>>, %arg11: memref<1x64xf32, #tpu.memory_space<vmem>>, %arg12: memref<64x32xf32, #tpu.memory_space<vmem>>, %arg13: memref<1x32xf32, #tpu.memory_space<vmem>>, %arg14: memref<2x8x32xf32, #tpu.memory_space<vmem>>) attributes {dimension_semantics = [#tpu.dimension_semantics<parallel>], iteration_bounds = array<i64: 1>, scalar_prefetch = 0 : i64, scratch_operands = 0 : i64, tpu.core_type = #tpu.core_type<tc>, window_params = [{transform_indices = @transform_0, window_bounds = array<i64: 2, 8, 32>}, {pipeline_mode = #tpu.pipeline_mode<synchronous>, transform_indices = @transform_1, window_bounds = array<i64: 32, 32>}, {pipeline_mode = #tpu.pipeline_mode<synchronous>, transform_indices = @transform_2, window_bounds = array<i64: 32, 32>}, {pipeline_mode = #tpu.pipeline_mode<synchronous>, transform_indices = @transform_3, window_bounds = array<i64: 32, 32>}, {pipeline_mode = #tpu.pipeline_mode<synchronous>, transform_indices = @transform_4, window_bounds = array<i64: 1, 32>}, {pipeline_mode = #tpu.pipeline_mode<synchronous>, transform_indices = @transform_5, window_bounds = array<i64: 1, 32>}, {pipeline_mode = #tpu.pipeline_mode<synchronous>, transform_indices = @transform_6, window_bounds = array<i64: 1, 32>}, {pipeline_mode = #tpu.pipeline_mode<synchronous>, transform_indices = @transform_7, window_bounds = array<i64: 32, 32>}, {pipeline_mode = #tpu.pipeline_mode<synchronous>, transform_indices = @transform_8, window_bounds = array<i64: 1, 32>}, {pipeline_mode = #tpu.pipeline_mode<synchronous>, transform_indices = @transform_9, window_bounds = array<i64: 32, 64>}, {pipeline_mode = #tpu.pipeline_mode<synchronous>, transform_indices = @transform_10, window_bounds = array<i64: 1, 64>}, {pipeline_mode = #tpu.pipeline_mode<synchronous>, transform_indices = @transform_11, window_bounds = array<i64: 64, 32>}, {pipeline_mode = #tpu.pipeline_mode<synchronous>, transform_indices = @transform_12, window_bounds = array<i64: 1, 32>}, {transform_indices = @transform_13, window_bounds = array<i64: 2, 8, 32>}]} {
    %c0 = arith.constant 0 : index
    %c0_0 = arith.constant 0 : index
    %c0_1 = arith.constant 0 : index
    %0 = vector.load %arg1[%c0, %c0_0, %c0_1] : memref<2x8x32xf32, #tpu.memory_space<vmem>>, vector<2x8x32xf32>
    %1 = vector.shape_cast %0 : vector<2x8x32xf32> to vector<16x32xf32>
    %c0_2 = arith.constant 0 : index
    %c0_3 = arith.constant 0 : index
    %2 = vector.load %arg2[%c0_2, %c0_3] : memref<32x32xf32, #tpu.memory_space<vmem>>, vector<32x32xf32>
    %cst = arith.constant dense<0.000000e+00> : vector<16x32xf32>
    %3 = tpu.matmul %1, %2, %cst {dimension_numbers = #tpu.dot_dimension_numbers<[1], [0], [0], [1], [0, 0, 1, 1], [], []>} : vector<16x32xf32>, vector<32x32xf32>, vector<16x32xf32> -> vector<16x32xf32>
    %c0_4 = arith.constant 0 : index
    %c0_5 = arith.constant 0 : index
    %4 = vector.load %arg5[%c0_4, %c0_5] : memref<1x32xf32, #tpu.memory_space<vmem>>, vector<1x32xf32>
    %5 = vector.broadcast %4 : vector<1x32xf32> to vector<16x32xf32>
    %6 = arith.addf %3, %5 : vector<16x32xf32>
    %cst_6 = arith.constant 0.353553385 : f32
    %7 = vector.broadcast %cst_6 : f32 to vector<16x32xf32>
    %8 = arith.mulf %6, %7 : vector<16x32xf32>
    %c0_7 = arith.constant 0 : index
    %c0_8 = arith.constant 0 : index
    %9 = vector.load %arg3[%c0_7, %c0_8] : memref<32x32xf32, #tpu.memory_space<vmem>>, vector<32x32xf32>
    %cst_9 = arith.constant dense<0.000000e+00> : vector<16x32xf32>
    %10 = tpu.matmul %1, %9, %cst_9 {dimension_numbers = #tpu.dot_dimension_numbers<[1], [0], [0], [1], [0, 0, 1, 1], [], []>} : vector<16x32xf32>, vector<32x32xf32>, vector<16x32xf32> -> vector<16x32xf32>
    %c0_10 = arith.constant 0 : index
    %c0_11 = arith.constant 0 : index
    %11 = vector.load %arg6[%c0_10, %c0_11] : memref<1x32xf32, #tpu.memory_space<vmem>>, vector<1x32xf32>
    %12 = vector.broadcast %11 : vector<1x32xf32> to vector<16x32xf32>
    %13 = arith.addf %10, %12 : vector<16x32xf32>
    %c0_12 = arith.constant 0 : index
    %c0_13 = arith.constant 0 : index
    %14 = vector.load %arg4[%c0_12, %c0_13] : memref<32x32xf32, #tpu.memory_space<vmem>>, vector<32x32xf32>
    %cst_14 = arith.constant dense<0.000000e+00> : vector<16x32xf32>
    %15 = tpu.matmul %1, %14, %cst_14 {dimension_numbers = #tpu.dot_dimension_numbers<[1], [0], [0], [1], [0, 0, 1, 1], [], []>} : vector<16x32xf32>, vector<32x32xf32>, vector<16x32xf32> -> vector<16x32xf32>
    %c0_15 = arith.constant 0 : index
    %c0_16 = arith.constant 0 : index
    %16 = vector.load %arg7[%c0_15, %c0_16] : memref<1x32xf32, #tpu.memory_space<vmem>>, vector<1x32xf32>
    %17 = vector.broadcast %16 : vector<1x32xf32> to vector<16x32xf32>
    %18 = arith.addf %15, %17 : vector<16x32xf32>
    %cst_17 = arith.constant 0.000000e+00 : f32
    %19 = vector.broadcast %cst_17 : f32 to vector<16x32xf32>
    %20 = vector.extract_strided_slice %8 {offsets = [0, 0], sizes = [16, 8], strides = [1, 1]} : vector<16x32xf32> to vector<16x8xf32>
    %21 = vector.shape_cast %20 : vector<16x8xf32> to vector<2x8x8xf32>
    %22 = vector.extract_strided_slice %13 {offsets = [0, 0], sizes = [16, 8], strides = [1, 1]} : vector<16x32xf32> to vector<16x8xf32>
    %23 = vector.shape_cast %22 : vector<16x8xf32> to vector<2x8x8xf32>
    %24 = vector.extract_strided_slice %18 {offsets = [0, 0], sizes = [16, 8], strides = [1, 1]} : vector<16x32xf32> to vector<16x8xf32>
    %25 = vector.shape_cast %24 : vector<16x8xf32> to vector<2x8x8xf32>
    "tpu.trace_start"() <{level = 10 : i32, message = "bld,bmd->blm"}> : () -> ()
    %cst_18 = arith.constant dense<0.000000e+00> : vector<2x8x8xf32>
    %26 = tpu.matmul %21, %23, %cst_18 {dimension_numbers = #tpu.dot_dimension_numbers<[2], [2], [1], [1], [0, 0, 0, 1, 1, 1], [0], [0]>} : vector<2x8x8xf32>, vector<2x8x8xf32>, vector<2x8x8xf32> -> vector<2x8x8xf32>
    "tpu.trace_stop"() : () -> ()
    %cst_19 = arith.constant dense<0xFF800000> : vector<2x8xf32>
    %27 = vector.multi_reduction <maximumf>, %26, %cst_19 [2] : vector<2x8x8xf32> to vector<2x8xf32>
    %28 = vector.shape_cast %27 : vector<2x8xf32> to vector<2x8x1xf32>
    %29 = vector.broadcast %28 : vector<2x8x1xf32> to vector<2x8x8xf32>
    %30 = arith.subf %26, %29 : vector<2x8x8xf32>
    %31 = math.exp %30 : vector<2x8x8xf32>
    %cst_20 = arith.constant dense<0.000000e+00> : vector<2x8xf32>
    %32 = vector.multi_reduction <add>, %31, %cst_20 [2] : vector<2x8x8xf32> to vector<2x8xf32>
    %33 = vector.shape_cast %32 : vector<2x8xf32> to vector<2x8x1xf32>
    %34 = tpu.reciprocal %33 {approx = true} : vector<2x8x1xf32> -> vector<2x8x1xf32>
    %35 = vector.broadcast %34 : vector<2x8x1xf32> to vector<2x8x8xf32>
    %36 = arith.mulf %31, %35 : vector<2x8x8xf32>
    "tpu.trace_start"() <{level = 10 : i32, message = "blm,bmd->bld"}> : () -> ()
    %cst_21 = arith.constant dense<0.000000e+00> : vector<2x8x8xf32>
    %37 = tpu.matmul %36, %25, %cst_21 {dimension_numbers = #tpu.dot_dimension_numbers<[2], [1], [1], [2], [0, 0, 0, 1, 1, 2], [0], [0]>} : vector<2x8x8xf32>, vector<2x8x8xf32>, vector<2x8x8xf32> -> vector<2x8x8xf32>
    "tpu.trace_stop"() : () -> ()
    %38 = vector.shape_cast %37 : vector<2x8x8xf32> to vector<16x8xf32>
    %c0_22 = arith.constant 0 : index
    %c0_23 = arith.constant 0 : index
    %39 = vector.load %arg8[%c0_22, %c0_23] : memref<32x32xf32, #tpu.memory_space<vmem>>, vector<8x32xf32>
    %cst_24 = arith.constant dense<0.000000e+00> : vector<16x32xf32>
    %40 = tpu.matmul %38, %39, %cst_24 {dimension_numbers = #tpu.dot_dimension_numbers<[1], [0], [0], [1], [0, 0, 1, 1], [], []>} : vector<16x8xf32>, vector<8x32xf32>, vector<16x32xf32> -> vector<16x32xf32>
    %41 = arith.addf %19, %40 : vector<16x32xf32>
    %42 = vector.extract_strided_slice %8 {offsets = [0, 8], sizes = [16, 8], strides = [1, 1]} : vector<16x32xf32> to vector<16x8xf32>
    %43 = vector.shape_cast %42 : vector<16x8xf32> to vector<2x8x8xf32>
    %44 = vector.extract_strided_slice %13 {offsets = [0, 8], sizes = [16, 8], strides = [1, 1]} : vector<16x32xf32> to vector<16x8xf32>
    %45 = vector.shape_cast %44 : vector<16x8xf32> to vector<2x8x8xf32>
    %46 = vector.extract_strided_slice %18 {offsets = [0, 8], sizes = [16, 8], strides = [1, 1]} : vector<16x32xf32> to vector<16x8xf32>
    %47 = vector.shape_cast %46 : vector<16x8xf32> to vector<2x8x8xf32>
    "tpu.trace_start"() <{level = 10 : i32, message = "bld,bmd->blm"}> : () -> ()
    %cst_25 = arith.constant dense<0.000000e+00> : vector<2x8x8xf32>
    %48 = tpu.matmul %43, %45, %cst_25 {dimension_numbers = #tpu.dot_dimension_numbers<[2], [2], [1], [1], [0, 0, 0, 1, 1, 1], [0], [0]>} : vector<2x8x8xf32>, vector<2x8x8xf32>, vector<2x8x8xf32> -> vector<2x8x8xf32>
    "tpu.trace_stop"() : () -> ()
    %cst_26 = arith.constant dense<0xFF800000> : vector<2x8xf32>
    %49 = vector.multi_reduction <maximumf>, %48, %cst_26 [2] : vector<2x8x8xf32> to vector<2x8xf32>
    %50 = vector.shape_cast %49 : vector<2x8xf32> to vector<2x8x1xf32>
    %51 = vector.broadcast %50 : vector<2x8x1xf32> to vector<2x8x8xf32>
    %52 = arith.subf %48, %51 : vector<2x8x8xf32>
    %53 = math.exp %52 : vector<2x8x8xf32>
    %cst_27 = arith.constant dense<0.000000e+00> : vector<2x8xf32>
    %54 = vector.multi_reduction <add>, %53, %cst_27 [2] : vector<2x8x8xf32> to vector<2x8xf32>
    %55 = vector.shape_cast %54 : vector<2x8xf32> to vector<2x8x1xf32>
    %56 = tpu.reciprocal %55 {approx = true} : vector<2x8x1xf32> -> vector<2x8x1xf32>
    %57 = vector.broadcast %56 : vector<2x8x1xf32> to vector<2x8x8xf32>
    %58 = arith.mulf %53, %57 : vector<2x8x8xf32>
    "tpu.trace_start"() <{level = 10 : i32, message = "blm,bmd->bld"}> : () -> ()
    %cst_28 = arith.constant dense<0.000000e+00> : vector<2x8x8xf32>
    %59 = tpu.matmul %58, %47, %cst_28 {dimension_numbers = #tpu.dot_dimension_numbers<[2], [1], [1], [2], [0, 0, 0, 1, 1, 2], [0], [0]>} : vector<2x8x8xf32>, vector<2x8x8xf32>, vector<2x8x8xf32> -> vector<2x8x8xf32>
    "tpu.trace_stop"() : () -> ()
    %60 = vector.shape_cast %59 : vector<2x8x8xf32> to vector<16x8xf32>
    %c8 = arith.constant 8 : index
    %c0_29 = arith.constant 0 : index
    %61 = vector.load %arg8[%c8, %c0_29] : memref<32x32xf32, #tpu.memory_space<vmem>>, vector<8x32xf32>
    %cst_30 = arith.constant dense<0.000000e+00> : vector<16x32xf32>
    %62 = tpu.matmul %60, %61, %cst_30 {dimension_numbers = #tpu.dot_dimension_numbers<[1], [0], [0], [1], [0, 0, 1, 1], [], []>} : vector<16x8xf32>, vector<8x32xf32>, vector<16x32xf32> -> vector<16x32xf32>
    %63 = arith.addf %41, %62 : vector<16x32xf32>
    %64 = vector.extract_strided_slice %8 {offsets = [0, 16], sizes = [16, 8], strides = [1, 1]} : vector<16x32xf32> to vector<16x8xf32>
    %65 = vector.shape_cast %64 : vector<16x8xf32> to vector<2x8x8xf32>
    %66 = vector.extract_strided_slice %13 {offsets = [0, 16], sizes = [16, 8], strides = [1, 1]} : vector<16x32xf32> to vector<16x8xf32>
    %67 = vector.shape_cast %66 : vector<16x8xf32> to vector<2x8x8xf32>
    %68 = vector.extract_strided_slice %18 {offsets = [0, 16], sizes = [16, 8], strides = [1, 1]} : vector<16x32xf32> to vector<16x8xf32>
    %69 = vector.shape_cast %68 : vector<16x8xf32> to vector<2x8x8xf32>
    "tpu.trace_start"() <{level = 10 : i32, message = "bld,bmd->blm"}> : () -> ()
    %cst_31 = arith.constant dense<0.000000e+00> : vector<2x8x8xf32>
    %70 = tpu.matmul %65, %67, %cst_31 {dimension_numbers = #tpu.dot_dimension_numbers<[2], [2], [1], [1], [0, 0, 0, 1, 1, 1], [0], [0]>} : vector<2x8x8xf32>, vector<2x8x8xf32>, vector<2x8x8xf32> -> vector<2x8x8xf32>
    "tpu.trace_stop"() : () -> ()
    %cst_32 = arith.constant dense<0xFF800000> : vector<2x8xf32>
    %71 = vector.multi_reduction <maximumf>, %70, %cst_32 [2] : vector<2x8x8xf32> to vector<2x8xf32>
    %72 = vector.shape_cast %71 : vector<2x8xf32> to vector<2x8x1xf32>
    %73 = vector.broadcast %72 : vector<2x8x1xf32> to vector<2x8x8xf32>
    %74 = arith.subf %70, %73 : vector<2x8x8xf32>
    %75 = math.exp %74 : vector<2x8x8xf32>
    %cst_33 = arith.constant dense<0.000000e+00> : vector<2x8xf32>
    %76 = vector.multi_reduction <add>, %75, %cst_33 [2] : vector<2x8x8xf32> to vector<2x8xf32>
    %77 = vector.shape_cast %76 : vector<2x8xf32> to vector<2x8x1xf32>
    %78 = tpu.reciprocal %77 {approx = true} : vector<2x8x1xf32> -> vector<2x8x1xf32>
    %79 = vector.broadcast %78 : vector<2x8x1xf32> to vector<2x8x8xf32>
    %80 = arith.mulf %75, %79 : vector<2x8x8xf32>
    "tpu.trace_start"() <{level = 10 : i32, message = "blm,bmd->bld"}> : () -> ()
    %cst_34 = arith.constant dense<0.000000e+00> : vector<2x8x8xf32>
    %81 = tpu.matmul %80, %69, %cst_34 {dimension_numbers = #tpu.dot_dimension_numbers<[2], [1], [1], [2], [0, 0, 0, 1, 1, 2], [0], [0]>} : vector<2x8x8xf32>, vector<2x8x8xf32>, vector<2x8x8xf32> -> vector<2x8x8xf32>
    "tpu.trace_stop"() : () -> ()
    %82 = vector.shape_cast %81 : vector<2x8x8xf32> to vector<16x8xf32>
    %c16 = arith.constant 16 : index
    %c0_35 = arith.constant 0 : index
    %83 = vector.load %arg8[%c16, %c0_35] : memref<32x32xf32, #tpu.memory_space<vmem>>, vector<8x32xf32>
    %cst_36 = arith.constant dense<0.000000e+00> : vector<16x32xf32>
    %84 = tpu.matmul %82, %83, %cst_36 {dimension_numbers = #tpu.dot_dimension_numbers<[1], [0], [0], [1], [0, 0, 1, 1], [], []>} : vector<16x8xf32>, vector<8x32xf32>, vector<16x32xf32> -> vector<16x32xf32>
    %85 = arith.addf %63, %84 : vector<16x32xf32>
    %86 = vector.extract_strided_slice %8 {offsets = [0, 24], sizes = [16, 8], strides = [1, 1]} : vector<16x32xf32> to vector<16x8xf32>
    %87 = vector.shape_cast %86 : vector<16x8xf32> to vector<2x8x8xf32>
    %88 = vector.extract_strided_slice %13 {offsets = [0, 24], sizes = [16, 8], strides = [1, 1]} : vector<16x32xf32> to vector<16x8xf32>
    %89 = vector.shape_cast %88 : vector<16x8xf32> to vector<2x8x8xf32>
    %90 = vector.extract_strided_slice %18 {offsets = [0, 24], sizes = [16, 8], strides = [1, 1]} : vector<16x32xf32> to vector<16x8xf32>
    %91 = vector.shape_cast %90 : vector<16x8xf32> to vector<2x8x8xf32>
    "tpu.trace_start"() <{level = 10 : i32, message = "bld,bmd->blm"}> : () -> ()
    %cst_37 = arith.constant dense<0.000000e+00> : vector<2x8x8xf32>
    %92 = tpu.matmul %87, %89, %cst_37 {dimension_numbers = #tpu.dot_dimension_numbers<[2], [2], [1], [1], [0, 0, 0, 1, 1, 1], [0], [0]>} : vector<2x8x8xf32>, vector<2x8x8xf32>, vector<2x8x8xf32> -> vector<2x8x8xf32>
    "tpu.trace_stop"() : () -> ()
    %cst_38 = arith.constant dense<0xFF800000> : vector<2x8xf32>
    %93 = vector.multi_reduction <maximumf>, %92, %cst_38 [2] : vector<2x8x8xf32> to vector<2x8xf32>
    %94 = vector.shape_cast %93 : vector<2x8xf32> to vector<2x8x1xf32>
    %95 = vector.broadcast %94 : vector<2x8x1xf32> to vector<2x8x8xf32>
    %96 = arith.subf %92, %95 : vector<2x8x8xf32>
    %97 = math.exp %96 : vector<2x8x8xf32>
    %cst_39 = arith.constant dense<0.000000e+00> : vector<2x8xf32>
    %98 = vector.multi_reduction <add>, %97, %cst_39 [2] : vector<2x8x8xf32> to vector<2x8xf32>
    %99 = vector.shape_cast %98 : vector<2x8xf32> to vector<2x8x1xf32>
    %100 = tpu.reciprocal %99 {approx = true} : vector<2x8x1xf32> -> vector<2x8x1xf32>
    %101 = vector.broadcast %100 : vector<2x8x1xf32> to vector<2x8x8xf32>
    %102 = arith.mulf %97, %101 : vector<2x8x8xf32>
    "tpu.trace_start"() <{level = 10 : i32, message = "blm,bmd->bld"}> : () -> ()
    %cst_40 = arith.constant dense<0.000000e+00> : vector<2x8x8xf32>
    %103 = tpu.matmul %102, %91, %cst_40 {dimension_numbers = #tpu.dot_dimension_numbers<[2], [1], [1], [2], [0, 0, 0, 1, 1, 2], [0], [0]>} : vector<2x8x8xf32>, vector<2x8x8xf32>, vector<2x8x8xf32> -> vector<2x8x8xf32>
    "tpu.trace_stop"() : () -> ()
    %104 = vector.shape_cast %103 : vector<2x8x8xf32> to vector<16x8xf32>
    %c24 = arith.constant 24 : index
    %c0_41 = arith.constant 0 : index
    %105 = vector.load %arg8[%c24, %c0_41] : memref<32x32xf32, #tpu.memory_space<vmem>>, vector<8x32xf32>
    %cst_42 = arith.constant dense<0.000000e+00> : vector<16x32xf32>
    %106 = tpu.matmul %104, %105, %cst_42 {dimension_numbers = #tpu.dot_dimension_numbers<[1], [0], [0], [1], [0, 0, 1, 1], [], []>} : vector<16x8xf32>, vector<8x32xf32>, vector<16x32xf32> -> vector<16x32xf32>
    %107 = arith.addf %85, %106 : vector<16x32xf32>
    %c0_43 = arith.constant 0 : index
    %c0_44 = arith.constant 0 : index
    %108 = vector.load %arg9[%c0_43, %c0_44] : memref<1x32xf32, #tpu.memory_space<vmem>>, vector<1x32xf32>
    %109 = vector.broadcast %108 : vector<1x32xf32> to vector<16x32xf32>
    %110 = arith.addf %107, %109 : vector<16x32xf32>
    %111 = arith.addf %1, %110 : vector<16x32xf32>
    %c0_45 = arith.constant 0 : index
    %c0_46 = arith.constant 0 : index
    %112 = vector.load %arg10[%c0_45, %c0_46] : memref<32x64xf32, #tpu.memory_space<vmem>>, vector<32x64xf32>
    %cst_47 = arith.constant dense<0.000000e+00> : vector<16x64xf32>
    %113 = tpu.matmul %111, %112, %cst_47 {dimension_numbers = #tpu.dot_dimension_numbers<[1], [0], [0], [1], [0, 0, 1, 1], [], []>} : vector<16x32xf32>, vector<32x64xf32>, vector<16x64xf32> -> vector<16x64xf32>
    %c0_48 = arith.constant 0 : index
    %c0_49 = arith.constant 0 : index
    %114 = vector.load %arg11[%c0_48, %c0_49] : memref<1x64xf32, #tpu.memory_space<vmem>>, vector<1x64xf32>
    %115 = vector.broadcast %114 : vector<1x64xf32> to vector<16x64xf32>
    %116 = arith.addf %113, %115 : vector<16x64xf32>
    %cst_50 = arith.constant 0.000000e+00 : f32
    %117 = vector.broadcast %cst_50 : f32 to vector<16x64xf32>
    %118 = arith.maximumf %116, %117 : vector<16x64xf32>
    %c0_51 = arith.constant 0 : index
    %c0_52 = arith.constant 0 : index
    %119 = vector.load %arg12[%c0_51, %c0_52] : memref<64x32xf32, #tpu.memory_space<vmem>>, vector<64x32xf32>
    %cst_53 = arith.constant dense<0.000000e+00> : vector<16x32xf32>
    %120 = tpu.matmul %118, %119, %cst_53 {dimension_numbers = #tpu.dot_dimension_numbers<[1], [0], [0], [1], [0, 0, 1, 1], [], []>} : vector<16x64xf32>, vector<64x32xf32>, vector<16x32xf32> -> vector<16x32xf32>
    %c0_54 = arith.constant 0 : index
    %c0_55 = arith.constant 0 : index
    %121 = vector.load %arg13[%c0_54, %c0_55] : memref<1x32xf32, #tpu.memory_space<vmem>>, vector<1x32xf32>
    %122 = vector.broadcast %121 : vector<1x32xf32> to vector<16x32xf32>
    %123 = arith.addf %120, %122 : vector<16x32xf32>
    %124 = arith.addf %111, %123 : vector<16x32xf32>
    %125 = vector.shape_cast %124 : vector<16x32xf32> to vector<2x8x32xf32>
    %c0_56 = arith.constant 0 : index
    %c0_57 = arith.constant 0 : index
    %c0_58 = arith.constant 0 : index
    %126 = vector.load %arg14[%c0_56, %c0_57, %c0_58] : memref<2x8x32xf32, #tpu.memory_space<vmem>>, vector<2x8x32xf32>
    tpu.vector_store %arg14[%c0_56, %c0_57, %c0_58], %125 {strides = array<i32>} : memref<2x8x32xf32, #tpu.memory_space<vmem>>, vector<2x8x32xf32>,
    return
  }
  func.func @transform_0(%arg0: i32) -> (i32, i32, i32) {
    %c0_i32 = arith.constant 0 : i32
    %c0_i32_0 = arith.constant 0 : i32
    %c0_i32_1 = arith.constant 0 : i32
    return %arg0, %c0_i32, %c0_i32_0 : i32, i32, i32
  }
  func.func @transform_1(%arg0: i32) -> (i32, i32) {
    %c0_i32 = arith.constant 0 : i32
    %c0_i32_0 = arith.constant 0 : i32
    %c0_i32_1 = arith.constant 0 : i32
    return %c0_i32, %c0_i32_0 : i32, i32
  }
  func.func @transform_2(%arg0: i32) -> (i32, i32) {
    %c0_i32 = arith.constant 0 : i32
    %c0_i32_0 = arith.constant 0 : i32
    %c0_i32_1 = arith.constant 0 : i32
    return %c0_i32, %c0_i32_0 : i32, i32
  }
  func.func @transform_3(%arg0: i32) -> (i32, i32) {
    %c0_i32 = arith.constant 0 : i32
    %c0_i32_0 = arith.constant 0 : i32
    %c0_i32_1 = arith.constant 0 : i32
    return %c0_i32, %c0_i32_0 : i32, i32
  }
  func.func @transform_4(%arg0: i32) -> (i32, i32) {
    %c0_i32 = arith.constant 0 : i32
    %c0_i32_0 = arith.constant 0 : i32
    %c0_i32_1 = arith.constant 0 : i32
    return %c0_i32, %c0_i32_0 : i32, i32
  }
  func.func @transform_5(%arg0: i32) -> (i32, i32) {
    %c0_i32 = arith.constant 0 : i32
    %c0_i32_0 = arith.constant 0 : i32
    %c0_i32_1 = arith.constant 0 : i32
    return %c0_i32, %c0_i32_0 : i32, i32
  }
  func.func @transform_6(%arg0: i32) -> (i32, i32) {
    %c0_i32 = arith.constant 0 : i32
    %c0_i32_0 = arith.constant 0 : i32
    %c0_i32_1 = arith.constant 0 : i32
    return %c0_i32, %c0_i32_0 : i32, i32
  }
  func.func @transform_7(%arg0: i32) -> (i32, i32) {
    %c0_i32 = arith.constant 0 : i32
    %c0_i32_0 = arith.constant 0 : i32
    %c0_i32_1 = arith.constant 0 : i32
    return %c0_i32, %c0_i32_0 : i32, i32
  }
  func.func @transform_8(%arg0: i32) -> (i32, i32) {
    %c0_i32 = arith.constant 0 : i32
    %c0_i32_0 = arith.constant 0 : i32
    %c0_i32_1 = arith.constant 0 : i32
    return %c0_i32, %c0_i32_0 : i32, i32
  }
  func.func @transform_9(%arg0: i32) -> (i32, i32) {
    %c0_i32 = arith.constant 0 : i32
    %c0_i32_0 = arith.constant 0 : i32
    %c0_i32_1 = arith.constant 0 : i32
    return %c0_i32, %c0_i32_0 : i32, i32
  }
  func.func @transform_10(%arg0: i32) -> (i32, i32) {
    %c0_i32 = arith.constant 0 : i32
    %c0_i32_0 = arith.constant 0 : i32
    %c0_i32_1 = arith.constant 0 : i32
    return %c0_i32, %c0_i32_0 : i32, i32
  }
  func.func @transform_11(%arg0: i32) -> (i32, i32) {
    %c0_i32 = arith.constant 0 : i32
    %c0_i32_0 = arith.constant 0 : i32
    %c0_i32_1 = arith.constant 0 : i32
    return %c0_i32, %c0_i32_0 : i32, i32
  }
  func.func @transform_12(%arg0: i32) -> (i32, i32) {
    %c0_i32 = arith.constant 0 : i32
    %c0_i32_0 = arith.constant 0 : i32
    %c0_i32_1 = arith.constant 0 : i32
    return %c0_i32, %c0_i32_0 : i32, i32
  }
  func.func @transform_13(%arg0: i32) -> (i32, i32, i32) {
    %c0_i32 = arith.constant 0 : i32
    %c0_i32_0 = arith.constant 0 : i32
    %c0_i32_1 = arith.constant 0 : i32
    return %arg0, %c0_i32, %c0_i32_0 : i32, i32, i32
  }
}

</mosaic_0001>

<llo_original>
// kernel: tpu_custom_call.1
$region0: #{tpu_custom_call.1}
  #allocation0 [shape = 'u32[]', space=smem, size = 0x4, offset = 0x4, fixed_abs, tag = 'smem constant byte address 0x4 - core index']
  #allocation1 [shape = 'u32[144,128]{1,0:T(1,128)}', space=vmem, size = 0x12000, scoped, tag = 'internal scratch']
  %s0 = inlined_call_operand.hbm [shape: f32[2,8,32], index: 0, kind: input, shape index: {}]
  %s1 = inlined_call_operand.vmem [shape: f32[32,32], index: 1, kind: input, shape index: {}]
  %s2 = inlined_call_operand.vmem [shape: f32[32,32], index: 2, kind: input, shape index: {}]
  %s3 = inlined_call_operand.vmem [shape: f32[32,32], index: 3, kind: input, shape index: {}]
  %s4 = inlined_call_operand.vmem [shape: f32[1,32], index: 4, kind: input, shape index: {}]
  %s5 = inlined_call_operand.vmem [shape: f32[1,32], index: 5, kind: input, shape index: {}]
  %s6 = inlined_call_operand.vmem [shape: f32[1,32], index: 6, kind: input, shape index: {}]
  %s7 = inlined_call_operand.hbm [shape: f32[32,32], index: 7, kind: input, shape index: {}]
  %s8 = inlined_call_operand.vmem [shape: f32[1,32], index: 8, kind: input, shape index: {}]
  %s9 = inlined_call_operand.hbm [shape: f32[32,64], index: 9, kind: input, shape index: {}]
  %s10 = inlined_call_operand.vmem [shape: f32[1,64], index: 10, kind: input, shape index: {}]
  %s11 = inlined_call_operand.vmem [shape: f32[64,32], index: 11, kind: input, shape index: {}]
  %s12 = inlined_call_operand.vmem [shape: f32[1,32], index: 12, kind: input, shape index: {}]
  %s13 = inlined_call_operand.hbm [shape: f32[2,8,32], index: 13, kind: output, shape index: {}]
  %s14 = sld [smem:[#allocation0]]
  $region74: #{tpu_custom_call.1} parent=0
    _
  %s16 = ssub.s32 1, %s14
  %s17 = scalar_select 0, %s16, %s14
  $region1: #{tpu_custom_call.1} parent=0
    #allocation2 [shape = 'u8[8192]{0}', space=vmem, size = 0x2000, scoped, tag = 'input window, operand 0, single buffered']
    #allocation3 [shape = 's32[1]{0}', space=sflag, size = 0x4, scoped, tag = 'scoped memory for tpu_custom_call.1']
    #allocation4 [shape = 's32[1]{0}', space=sflag, size = 0x4, scoped, tag = 'scoped memory for tpu_custom_call.1']
    #allocation5 [shape = 'u8[16384]{0}', space=vmem, size = 0x4000, scoped, tag = 'input window, operand 7, single buffered']
    #allocation6 [shape = 's32[1]{0}', space=sflag, size = 0x4, scoped, tag = 'scoped memory for tpu_custom_call.1']
    #allocation7 [shape = 'u8[16384]{0}', space=vmem, size = 0x4000, scoped, tag = 'input window, operand 9, single buffered']
    #allocation8 [shape = 'u8[8192]{0}', space=vmem, size = 0x2000, scoped, tag = 'output window, operand 0, single buffered']
    %18 = vsyncpa [#allocation3], 0
    %19 = vsyncpa [#allocation6], 0
    %20 = vsyncpa [#allocation4], 0
    // Predicated region
    $region2: #{tpu_custom_call.1} parent=1 // pred_check
      _
    $region3: #{tpu_custom_call.1} parent=1 // pred_check_branch
      %22 = sbr.rel (0) target = $region5
    $region4: #{tpu_custom_call.1} parent=1 // pred_region
      %s24 = ssub.s32 256, 256
      %25 = vsyncadd [#allocation3], %s24
      %s26 = sshll.u32 [#allocation2], 4
      %s27 = int_to_ptr.vmem [resolvable:$true] %s26
      %32 = dma.hbm_to_vmem [thread:$0]  %s0, 256, %s27, [#allocation3], 128, 128, 8
    $region5: #{tpu_custom_call.1} parent=1 // pred_fallthru
      _
    // Predicated region
    $region6: #{tpu_custom_call.1} parent=1 // pred_check
      _
    $region7: #{tpu_custom_call.1} parent=1 // pred_check_branch
      %34 = sbr.rel (0) target = $region9
    $region8: #{tpu_custom_call.1} parent=1 // pred_region
      _
    $region9: #{tpu_custom_call.1} parent=1 // pred_fallthru
      _
    // Predicated region
    $region10: #{tpu_custom_call.1} parent=1 // pred_check
      _
    $region11: #{tpu_custom_call.1} parent=1 // pred_check_branch
      %36 = sbr.rel (0) target = $region13
    $region12: #{tpu_custom_call.1} parent=1 // pred_region
      _
    $region13: #{tpu_custom_call.1} parent=1 // pred_fallthru
      _
    // Predicated region
    $region14: #{tpu_custom_call.1} parent=1 // pred_check
      _
    $region15: #{tpu_custom_call.1} parent=1 // pred_check_branch
      %38 = sbr.rel (0) target = $region17
    $region16: #{tpu_custom_call.1} parent=1 // pred_region
      _
    $region17: #{tpu_custom_call.1} parent=1 // pred_fallthru
      _
    // Predicated region
    $region18: #{tpu_custom_call.1} parent=1 // pred_check
      _
    $region19: #{tpu_custom_call.1} parent=1 // pred_check_branch
      %40 = sbr.rel (0) target = $region21
    $region20: #{tpu_custom_call.1} parent=1 // pred_region
      _
    $region21: #{tpu_custom_call.1} parent=1 // pred_fallthru
      _
    // Predicated region
    $region22: #{tpu_custom_call.1} parent=1 // pred_check
      _
    $region23: #{tpu_custom_call.1} parent=1 // pred_check_branch
      %42 = sbr.rel (0) target = $region25
    $region24: #{tpu_custom_call.1} parent=1 // pred_region
      _
    $region25: #{tpu_custom_call.1} parent=1 // pred_fallthru
      _
    // Predicated region
    $region26: #{tpu_custom_call.1} parent=1 // pred_check
      _
    $region27: #{tpu_custom_call.1} parent=1 // pred_check_branch
      %44 = sbr.rel (0) target = $region29
    $region28: #{tpu_custom_call.1} parent=1 // pred_region
      _
    $region29: #{tpu_custom_call.1} parent=1 // pred_fallthru
      _
    // Predicated region
    $region30: #{tpu_custom_call.1} parent=1 // pred_check
      _
    $region31: #{tpu_custom_call.1} parent=1 // pred_check_branch
      %46 = sbr.rel (0) target = $region33
    $region32: #{tpu_custom_call.1} parent=1 // pred_region
      %s48 = ssub.s32 512, 512
      %49 = vsyncadd [#allocation6], %s48
      %s50 = sshll.u32 [#allocation5], 4
      %s51 = int_to_ptr.vmem [resolvable:$true] %s50
      %56 = dma.hbm_to_vmem [thread:$0]  %s7, 512, %s51, [#allocation6], 128, 128, 8
    $region33: #{tpu_custom_call.1} parent=1 // pred_fallthru
      _
    // Predicated region
    $region34: #{tpu_custom_call.1} parent=1 // pred_check
      _
    $region35: #{tpu_custom_call.1} parent=1 // pred_check_branch
      %58 = sbr.rel (0) target = $region37
    $region36: #{tpu_custom_call.1} parent=1 // pred_region
      _
    $region37: #{tpu_custom_call.1} parent=1 // pred_fallthru
      _
    // Predicated region
    $region38: #{tpu_custom_call.1} parent=1 // pred_check
      _
    $region39: #{tpu_custom_call.1} parent=1 // pred_check_branch
      %60 = sbr.rel (0) target = $region41
    $region40: #{tpu_custom_call.1} parent=1 // pred_region
      %s62 = ssub.s32 512, 512
      %63 = vsyncadd [#allocation6], %s62
      %s64 = sshll.u32 [#allocation7], 4
      %s65 = int_to_ptr.vmem [resolvable:$true] %s64
      %70 = dma.hbm_to_vmem [thread:$0]  %s9, 512, %s65, [#allocation6], 128, 128, 8
    $region41: #{tpu_custom_call.1} parent=1 // pred_fallthru
      _
    // Predicated region
    $region42: #{tpu_custom_call.1} parent=1 // pred_check
      _
    $region43: #{tpu_custom_call.1} parent=1 // pred_check_branch
      %72 = sbr.rel (0) target = $region45
    $region44: #{tpu_custom_call.1} parent=1 // pred_region
      _
    $region45: #{tpu_custom_call.1} parent=1 // pred_fallthru
      _
    // Predicated region
    $region46: #{tpu_custom_call.1} parent=1 // pred_check
      _
    $region47: #{tpu_custom_call.1} parent=1 // pred_check_branch
      %74 = sbr.rel (0) target = $region49
    $region48: #{tpu_custom_call.1} parent=1 // pred_region
      _
    $region49: #{tpu_custom_call.1} parent=1 // pred_fallthru
      _
    // Predicated region
    $region50: #{tpu_custom_call.1} parent=1 // pred_check
      _
    $region51: #{tpu_custom_call.1} parent=1 // pred_check_branch
      %76 = sbr.rel (0) target = $region53
    $region52: #{tpu_custom_call.1} parent=1 // pred_region
      _
    $region53: #{tpu_custom_call.1} parent=1 // pred_fallthru
      _
    // Predicated region
    $region54: #{tpu_custom_call.1} parent=1 // pred_check
      _
    $region55: #{tpu_custom_call.1} parent=1 // pred_check_branch
      %78 = sbr.rel (0) target = $region57
    $region56: #{tpu_custom_call.1} parent=1 // pred_region
      %79 = dma.done [#allocation3], 256
    $region57: #{tpu_custom_call.1} parent=1 // pred_fallthru
      _
    // Predicated region
    $region58: #{tpu_custom_call.1} parent=1 // pred_check
      _
    $region59: #{tpu_custom_call.1} parent=1 // pred_check_branch
      %81 = sbr.rel (0) target = $region61
    $region60: #{tpu_custom_call.1} parent=1 // pred_region
      %82 = dma.done [#allocation6], 512
    $region61: #{tpu_custom_call.1} parent=1 // pred_fallthru
      _
    // Predicated region
    $region62: #{tpu_custom_call.1} parent=1 // pred_check
      _
    $region63: #{tpu_custom_call.1} parent=1 // pred_check_branch
      %84 = sbr.rel (0) target = $region65
    $region64: #{tpu_custom_call.1} parent=1 // pred_region
      %85 = dma.done [#allocation6], 512
    $region65: #{tpu_custom_call.1} parent=1 // pred_fallthru
      _
    %v86 = vld [vmem:[#allocation2] sm:$0xff]
    %v87 = vld [vmem:[#allocation2 + $0x8] sm:$0xff]
    %v88 = vld [vmem:[%s1] sm:$0xff]
    %v89 = vld [vmem:[%s1 + $0x8] sm:$0xff]
    %v90 = vld [vmem:[%s1 + $0x10] sm:$0xff]
    %v91 = vld [vmem:[%s1 + $0x18] sm:$0xff]
    %v92 = vld [vmem:[%s4] sm:$0x1]
    %v94 = vlaneseq
    %v95 = vshrl.u32 %v94, 7
    %v96 = vsub.s32 0, %v95
    %v97 = vrot.slane %v92, %v96
    %vm99 = vcmask 261120
    %v101 = vsel %vm99, %v86, 0
    %v104 = vsel %vm99, %v87, 0
    %106 = vmatprep.subr.mxu0 0.0
    %107 = vmatpush1.msra.mxu0 %v88
    %108 = vmatprep.subr.mxu0 0.0
    %109 = vmatpush1.msra.mxu0 %v89
    %110 = vmatprep.subr.mxu0 0.0
    %111 = vmatpush1.msra.mxu0 %v90
    %112 = vmatprep.subr.mxu0 0.0
    %113 = vmatpush1.msra.mxu0 %v91
    %114 = vmatprep.subr.mxu0 0.0
    %115 = vmatpush1.msra.mxu0 0.0
    %116 = vmatprep.subr.mxu0 0.0
    %117 = vmatpush1.msra.mxu0 0.0
    %118 = vmatprep.subr.mxu0 0.0
    %119 = vmatpush1.msra.mxu0 0.0
    %120 = vmatprep.subr.mxu0 0.0
    %121 = vmatpush1.msra.mxu0 0.0
    %122 = vmatprep.subr.mxu0 0.0
    %123 = vmatpush1.msra.mxu0 0.0
    %124 = vmatprep.subr.mxu0 0.0
    %125 = vmatpush1.msra.mxu0 0.0
    %126 = vmatprep.subr.mxu0 0.0
    %127 = vmatpush1.msra.mxu0 0.0
    %128 = vmatprep.subr.mxu0 0.0
    %129 = vmatpush1.msra.mxu0 0.0
    %130 = vmatprep.subr.mxu0 0.0
    %131 = vmatpush1.msra.mxu0 0.0
    %132 = vmatprep.subr.mxu0 0.0
    %133 = vmatpush1.msra.mxu0 0.0
    %134 = vmatprep.subr.mxu0 0.0
    %135 = vmatpush1.msra.mxu0 0.0
    %136 = vmatprep.subr.mxu0 0.0
    %137 = vmatpush1.msra.mxu0 0.0
    %138 = vmatprep.subr.mxu0 0.0
    %139 = vmatpush1.msra.mxu0 0.0
    %140 = vmatprep.subr.mxu0 0.0
    %141 = vmatpush1.msra.mxu0 0.0
    %142 = vmatprep.subr.mxu0 0.0
    %143 = vmatpush1.msra.mxu0 0.0
    %144 = vmatprep.subr.mxu0 0.0
    %145 = vmatpush1.msra.mxu0 0.0
    %146 = vmatprep.subr.mxu0 0.0
    %147 = vmatpush1.msra.mxu0 0.0
    %148 = vmatprep.subr.mxu0 0.0
    %149 = vmatpush1.msra.mxu0 0.0
    %150 = vmatprep.subr.mxu0 0.0
    %151 = vmatpush1.msra.mxu0 0.0
    %152 = vmatprep.subr.mxu0 0.0
    %153 = vmatpush1.msra.mxu0 0.0
    %154 = vmatprep.subr.mxu0 0.0
    %155 = vmatpush1.msra.mxu0 0.0
    %156 = vmatprep.subr.mxu0 0.0
    %157 = vmatpush1.msra.mxu0 0.0
    %158 = vmatprep.subr.mxu0 0.0
    %159 = vmatpush1.msra.mxu0 0.0
    %160 = vmatprep.subr.mxu0 0.0
    %161 = vmatpush1.msra.mxu0 0.0
    %162 = vmatprep.subr.mxu0 0.0
    %163 = vmatpush1.msra.mxu0 0.0
    %164 = vmatprep.subr.mxu0 0.0
    %165 = vmatpush1.msra.mxu0 0.0
    %166 = vmatprep.subr.mxu0 0.0
    %167 = vmatpush1.msra.mxu0 0.0
    %168 = vmatprep.subr.mxu0 0.0
    %169 = vmatpush1.msra.mxu0 0.0
    %170 = vmatprep.mubr.f32.mxu0 0.0
    %171 = vmatmul.mubr.f32.gmra.mrb[0].mxu0 %v101
    %v172 = vpop.f32.mrb[0].mxu0
    %v173 = vadd.f32 %v97, %v172
    %v174 = vpop.f32.mrb[0].mxu0
    %175 = vmatprep.mubr.f32.mxu0 0.0
    %176 = vmatmul.mubr.f32.gmra.mrb[0].mxu0 %v104
    %v177 = vpop.f32.mrb[0].mxu0
    %v178 = vadd.f32 %v97, %v177
    %v179 = vpop.f32.mrb[0].mxu0
    %180 = vdwg.mxu0
    %v181 = vmul.f32 %v173, 0.35355338
    %v182 = vmul.f32 %v178, 0.35355338
    %v183 = vld [vmem:[%s2] sm:$0xff]
    %v184 = vld [vmem:[%s2 + $0x8] sm:$0xff]
    %v185 = vld [vmem:[%s2 + $0x10] sm:$0xff]
    %v186 = vld [vmem:[%s2 + $0x18] sm:$0xff]
    %v187 = vld [vmem:[%s5] sm:$0x1]
    %v189 = vlaneseq
    %v190 = vshrl.u32 %v189, 7
    %v191 = vsub.s32 0, %v190
    %v192 = vrot.slane %v187, %v191
    %194 = vmatprep.subr.mxu0 0.0
    %195 = vmatpush1.msra.mxu0 %v183
    %196 = vmatprep.subr.mxu0 0.0
    %197 = vmatpush1.msra.mxu0 %v184
    %198 = vmatprep.subr.mxu0 0.0
    %199 = vmatpush1.msra.mxu0 %v185
    %200 = vmatprep.subr.mxu0 0.0
    %201 = vmatpush1.msra.mxu0 %v186
    %202 = vmatprep.subr.mxu0 0.0
    %203 = vmatpush1.msra.mxu0 0.0
    %204 = vmatprep.subr.mxu0 0.0
    %205 = vmatpush1.msra.mxu0 0.0
    %206 = vmatprep.subr.mxu0 0.0
    %207 = vmatpush1.msra.mxu0 0.0
    %208 = vmatprep.subr.mxu0 0.0
    %209 = vmatpush1.msra.mxu0 0.0
    %210 = vmatprep.subr.mxu0 0.0
    %211 = vmatpush1.msra.mxu0 0.0
    %212 = vmatprep.subr.mxu0 0.0
    %213 = vmatpush1.msra.mxu0 0.0
    %214 = vmatprep.subr.mxu0 0.0
    %215 = vmatpush1.msra.mxu0 0.0
    %216 = vmatprep.subr.mxu0 0.0
    %217 = vmatpush1.msra.mxu0 0.0
    %218 = vmatprep.subr.mxu0 0.0
    %219 = vmatpush1.msra.mxu0 0.0
    %220 = vmatprep.subr.mxu0 0.0
    %221 = vmatpush1.msra.mxu0 0.0
    %222 = vmatprep.subr.mxu0 0.0
    %223 = vmatpush1.msra.mxu0 0.0
    %224 = vmatprep.subr.mxu0 0.0
    %225 = vmatpush1.msra.mxu0 0.0
    %226 = vmatprep.subr.mxu0 0.0
    %227 = vmatpush1.msra.mxu0 0.0
    %228 = vmatprep.subr.mxu0 0.0
    %229 = vmatpush1.msra.mxu0 0.0
    %230 = vmatprep.subr.mxu0 0.0
    %231 = vmatpush1.msra.mxu0 0.0
    %232 = vmatprep.subr.mxu0 0.0
    %233 = vmatpush1.msra.mxu0 0.0
    %234 = vmatprep.subr.mxu0 0.0
    %235 = vmatpush1.msra.mxu0 0.0
    %236 = vmatprep.subr.mxu0 0.0
    %237 = vmatpush1.msra.mxu0 0.0
    %238 = vmatprep.subr.mxu0 0.0
    %239 = vmatpush1.msra.mxu0 0.0
    %240 = vmatprep.subr.mxu0 0.0
    %241 = vmatpush1.msra.mxu0 0.0
    %242 = vmatprep.subr.mxu0 0.0
    %243 = vmatpush1.msra.mxu0 0.0
    %244 = vmatprep.subr.mxu0 0.0
    %245 = vmatpush1.msra.mxu0 0.0
    %246 = vmatprep.subr.mxu0 0.0
    %247 = vmatpush1.msra.mxu0 0.0
    %248 = vmatprep.subr.mxu0 0.0
    %249 = vmatpush1.msra.mxu0 0.0
    %250 = vmatprep.subr.mxu0 0.0
    %251 = vmatpush1.msra.mxu0 0.0
    %252 = vmatprep.subr.mxu0 0.0
    %253 = vmatpush1.msra.mxu0 0.0
    %254 = vmatprep.subr.mxu0 0.0
    %255 = vmatpush1.msra.mxu0 0.0
    %256 = vmatprep.subr.mxu0 0.0
    %257 = vmatpush1.msra.mxu0 0.0
    %258 = vmatprep.mubr.f32.mxu0 0.0
    %259 = vmatmul.mubr.f32.gmra.mrb[0].mxu0 %v101
    %v260 = vpop.f32.mrb[0].mxu0
    %v261 = vadd.f32 %v192, %v260
    %v262 = vpop.f32.mrb[0].mxu0
    %263 = vmatprep.mubr.f32.mxu0 0.0
    %264 = vmatmul.mubr.f32.gmra.mrb[0].mxu0 %v104
    %v265 = vpop.f32.mrb[0].mxu0
    %v266 = vadd.f32 %v192, %v265
    %v267 = vpop.f32.mrb[0].mxu0
    %268 = vdwg.mxu0
    %v269 = vld [vmem:[%s3] sm:$0xff]
    %v270 = vld [vmem:[%s3 + $0x8] sm:$0xff]
    %v271 = vld [vmem:[%s3 + $0x10] sm:$0xff]
    %v272 = vld [vmem:[%s3 + $0x18] sm:$0xff]
    %v273 = vld [vmem:[%s6] sm:$0x1]
    %v275 = vlaneseq
    %v276 = vshrl.u32 %v275, 7
    %v277 = vsub.s32 0, %v276
    %v278 = vrot.slane %v273, %v277
    %280 = vmatprep.subr.mxu0 0.0
    %281 = vmatpush1.msra.mxu0 %v269
    %282 = vmatprep.subr.mxu0 0.0
    %283 = vmatpush1.msra.mxu0 %v270
    %284 = vmatprep.subr.mxu0 0.0
    %285 = vmatpush1.msra.mxu0 %v271
    %286 = vmatprep.subr.mxu0 0.0
    %287 = vmatpush1.msra.mxu0 %v272
    %288 = vmatprep.subr.mxu0 0.0
    %289 = vmatpush1.msra.mxu0 0.0
    %290 = vmatprep.subr.mxu0 0.0
    %291 = vmatpush1.msra.mxu0 0.0
    %292 = vmatprep.subr.mxu0 0.0
    %293 = vmatpush1.msra.mxu0 0.0
    %294 = vmatprep.subr.mxu0 0.0
    %295 = vmatpush1.msra.mxu0 0.0
    %296 = vmatprep.subr.mxu0 0.0
    %297 = vmatpush1.msra.mxu0 0.0
    %298 = vmatprep.subr.mxu0 0.0
    %299 = vmatpush1.msra.mxu0 0.0
    %300 = vmatprep.subr.mxu0 0.0
    %301 = vmatpush1.msra.mxu0 0.0
    %302 = vmatprep.subr.mxu0 0.0
    %303 = vmatpush1.msra.mxu0 0.0
    %304 = vmatprep.subr.mxu0 0.0
    %305 = vmatpush1.msra.mxu0 0.0
    %306 = vmatprep.subr.mxu0 0.0
    %307 = vmatpush1.msra.mxu0 0.0
    %308 = vmatprep.subr.mxu0 0.0
    %309 = vmatpush1.msra.mxu0 0.0
    %310 = vmatprep.subr.mxu0 0.0
    %311 = vmatpush1.msra.mxu0 0.0
    %312 = vmatprep.subr.mxu0 0.0
    %313 = vmatpush1.msra.mxu0 0.0
    %314 = vmatprep.subr.mxu0 0.0
    %315 = vmatpush1.msra.mxu0 0.0
    %316 = vmatprep.subr.mxu0 0.0
    %317 = vmatpush1.msra.mxu0 0.0
    %318 = vmatprep.subr.mxu0 0.0
    %319 = vmatpush1.msra.mxu0 0.0
    %320 = vmatprep.subr.mxu0 0.0
    %321 = vmatpush1.msra.mxu0 0.0
    %322 = vmatprep.subr.mxu0 0.0
    %323 = vmatpush1.msra.mxu0 0.0
    %324 = vmatprep.subr.mxu0 0.0
    %325 = vmatpush1.msra.mxu0 0.0
    %326 = vmatprep.subr.mxu0 0.0
    %327 = vmatpush1.msra.mxu0 0.0
    %328 = vmatprep.subr.mxu0 0.0
    %329 = vmatpush1.msra.mxu0 0.0
    %330 = vmatprep.subr.mxu0 0.0
    %331 = vmatpush1.msra.mxu0 0.0
    %332 = vmatprep.subr.mxu0 0.0
    %333 = vmatpush1.msra.mxu0 0.0
    %334 = vmatprep.subr.mxu0 0.0
    %335 = vmatpush1.msra.mxu0 0.0
    %336 = vmatprep.subr.mxu0 0.0
    %337 = vmatpush1.msra.mxu0 0.0
    %338 = vmatprep.subr.mxu0 0.0
    %339 = vmatpush1.msra.mxu0 0.0
    %340 = vmatprep.subr.mxu0 0.0
    %341 = vmatpush1.msra.mxu0 0.0
    %342 = vmatprep.subr.mxu0 0.0
    %343 = vmatpush1.msra.mxu0 0.0
    %344 = vmatprep.mubr.f32.mxu0 0.0
    %345 = vmatmul.mubr.f32.gmra.mrb[0].mxu0 %v101
    %v346 = vpop.f32.mrb[0].mxu0
    %v347 = vadd.f32 %v278, %v346
    %v348 = vpop.f32.mrb[0].mxu0
    %349 = vmatprep.mubr.f32.mxu0 0.0
    %350 = vmatmul.mubr.f32.gmra.mrb[0].mxu0 %v104
    %v351 = vpop.f32.mrb[0].mxu0
    %v352 = vadd.f32 %v278, %v351
    %v353 = vpop.f32.mrb[0].mxu0
    %354 = vdwg.mxu0
    %vm355 = vcmask 64512
    %v357 = vsel %vm355, %v181, 0
    %v360 = vsel %vm355, %v261, 0
    %362 = vmatprep.subr.mxu0 0.0
    %363 = vmatpush1.xpose.msra.mxu0 %v360
    %364 = vmatprep.subr.mxu0 0.0
    %365 = vmatpush1.xpose.msra.mxu0 0.0
    %366 = vmatprep.subr.mxu0 0.0
    %367 = vmatpush1.xpose.msra.mxu0 0.0
    %368 = vmatprep.subr.mxu0 0.0
    %369 = vmatpush1.xpose.msra.mxu0 0.0
    %370 = vmatprep.subr.mxu0 0.0
    %371 = vmatpush1.xpose.msra.mxu0 0.0
    %372 = vmatprep.subr.mxu0 0.0
    %373 = vmatpush1.xpose.msra.mxu0 0.0
    %374 = vmatprep.subr.mxu0 0.0
    %375 = vmatpush1.xpose.msra.mxu0 0.0
    %376 = vmatprep.subr.mxu0 0.0
    %377 = vmatpush1.xpose.msra.mxu0 0.0
    %378 = vmatprep.subr.mxu0 0.0
    %379 = vmatpush1.xpose.msra.mxu0 0.0
    %380 = vmatprep.subr.mxu0 0.0
    %381 = vmatpush1.xpose.msra.mxu0 0.0
    %382 = vmatprep.subr.mxu0 0.0
    %383 = vmatpush1.xpose.msra.mxu0 0.0
    %384 = vmatprep.subr.mxu0 0.0
    %385 = vmatpush1.xpose.msra.mxu0 0.0
    %386 = vmatprep.subr.mxu0 0.0
    %387 = vmatpush1.xpose.msra.mxu0 0.0
    %388 = vmatprep.subr.mxu0 0.0
    %389 = vmatpush1.xpose.msra.mxu0 0.0
    %390 = vmatprep.subr.mxu0 0.0
    %391 = vmatpush1.xpose.msra.mxu0 0.0
    %392 = vmatprep.subr.mxu0 0.0
    %393 = vmatpush1.xpose.msra.mxu0 0.0
    %394 = vmatprep.subr.mxu0 0.0
    %395 = vmatpush1.xpose.msra.mxu0 0.0
    %396 = vmatprep.subr.mxu0 0.0
    %397 = vmatpush1.xpose.msra.mxu0 0.0
    %398 = vmatprep.subr.mxu0 0.0
    %399 = vmatpush1.xpose.msra.mxu0 0.0
    %400 = vmatprep.subr.mxu0 0.0
    %401 = vmatpush1.xpose.msra.mxu0 0.0
    %402 = vmatprep.subr.mxu0 0.0
    %403 = vmatpush1.xpose.msra.mxu0 0.0
    %404 = vmatprep.subr.mxu0 0.0
    %405 = vmatpush1.xpose.msra.mxu0 0.0
    %406 = vmatprep.subr.mxu0 0.0
    %407 = vmatpush1.xpose.msra.mxu0 0.0
    %408 = vmatprep.subr.mxu0 0.0
    %409 = vmatpush1.xpose.msra.mxu0 0.0
    %410 = vmatprep.subr.mxu0 0.0
    %411 = vmatpush1.xpose.msra.mxu0 0.0
    %412 = vmatprep.subr.mxu0 0.0
    %413 = vmatpush1.xpose.msra.mxu0 0.0
    %414 = vmatprep.subr.mxu0 0.0
    %415 = vmatpush1.xpose.msra.mxu0 0.0
    %416 = vmatprep.subr.mxu0 0.0
    %417 = vmatpush1.xpose.msra.mxu0 0.0
    %418 = vmatprep.subr.mxu0 0.0
    %419 = vmatpush1.xpose.msra.mxu0 0.0
    %420 = vmatprep.subr.mxu0 0.0
    %421 = vmatpush1.xpose.msra.mxu0 0.0
    %422 = vmatprep.subr.mxu0 0.0
    %423 = vmatpush1.xpose.msra.mxu0 0.0
    %424 = vmatprep.subr.mxu0 0.0
    %425 = vmatpush1.xpose.msra.mxu0 0.0
    %426 = vmatprep.mubr.f32.mxu0 0.0
    %427 = vmatmul.mubr.f32.gmra.mrb[0].mxu0 %v357
    %v428 = vpop.f32.mrb[0].mxu0
    %v429 = vadd.f32 0.0, %v428
    %v430 = vpop.f32.mrb[0].mxu0
    %431 = vdwg.mxu0
    %v433 = vsel %vm355, %v182, 0
    %v436 = vsel %vm355, %v266, 0
    %438 = vmatprep.subr.mxu0 0.0
    %439 = vmatpush1.xpose.msra.mxu0 %v436
    %440 = vmatprep.subr.mxu0 0.0
    %441 = vmatpush1.xpose.msra.mxu0 0.0
    %442 = vmatprep.subr.mxu0 0.0
    %443 = vmatpush1.xpose.msra.mxu0 0.0
    %444 = vmatprep.subr.mxu0 0.0
    %445 = vmatpush1.xpose.msra.mxu0 0.0
    %446 = vmatprep.subr.mxu0 0.0
    %447 = vmatpush1.xpose.msra.mxu0 0.0
    %448 = vmatprep.subr.mxu0 0.0
    %449 = vmatpush1.xpose.msra.mxu0 0.0
    %450 = vmatprep.subr.mxu0 0.0
    %451 = vmatpush1.xpose.msra.mxu0 0.0
    %452 = vmatprep.subr.mxu0 0.0
    %453 = vmatpush1.xpose.msra.mxu0 0.0
    %454 = vmatprep.subr.mxu0 0.0
    %455 = vmatpush1.xpose.msra.mxu0 0.0
    %456 = vmatprep.subr.mxu0 0.0
    %457 = vmatpush1.xpose.msra.mxu0 0.0
    %458 = vmatprep.subr.mxu0 0.0
    %459 = vmatpush1.xpose.msra.mxu0 0.0
    %460 = vmatprep.subr.mxu0 0.0
    %461 = vmatpush1.xpose.msra.mxu0 0.0
    %462 = vmatprep.subr.mxu0 0.0
    %463 = vmatpush1.xpose.msra.mxu0 0.0
    %464 = vmatprep.subr.mxu0 0.0
    %465 = vmatpush1.xpose.msra.mxu0 0.0
    %466 = vmatprep.subr.mxu0 0.0
    %467 = vmatpush1.xpose.msra.mxu0 0.0
    %468 = vmatprep.subr.mxu0 0.0
    %469 = vmatpush1.xpose.msra.mxu0 0.0
    %470 = vmatprep.subr.mxu0 0.0
    %471 = vmatpush1.xpose.msra.mxu0 0.0
    %472 = vmatprep.subr.mxu0 0.0
    %473 = vmatpush1.xpose.msra.mxu0 0.0
    %474 = vmatprep.subr.mxu0 0.0
    %475 = vmatpush1.xpose.msra.mxu0 0.0
    %476 = vmatprep.subr.mxu0 0.0
    %477 = vmatpush1.xpose.msra.mxu0 0.0
    %478 = vmatprep.subr.mxu0 0.0
    %479 = vmatpush1.xpose.msra.mxu0 0.0
    %480 = vmatprep.subr.mxu0 0.0
    %481 = vmatpush1.xpose.msra.mxu0 0.0
    %482 = vmatprep.subr.mxu0 0.0
    %483 = vmatpush1.xpose.msra.mxu0 0.0
    %484 = vmatprep.subr.mxu0 0.0
    %485 = vmatpush1.xpose.msra.mxu0 0.0
    %486 = vmatprep.subr.mxu0 0.0
    %487 = vmatpush1.xpose.msra.mxu0 0.0
    %488 = vmatprep.subr.mxu0 0.0
    %489 = vmatpush1.xpose.msra.mxu0 0.0
    %490 = vmatprep.subr.mxu0 0.0
    %491 = vmatpush1.xpose.msra.mxu0 0.0
    %492 = vmatprep.subr.mxu0 0.0
    %493 = vmatpush1.xpose.msra.mxu0 0.0
    %494 = vmatprep.subr.mxu0 0.0
    %495 = vmatpush1.xpose.msra.mxu0 0.0
    %496 = vmatprep.subr.mxu0 0.0
    %497 = vmatpush1.xpose.msra.mxu0 0.0
    %498 = vmatprep.subr.mxu0 0.0
    %499 = vmatpush1.xpose.msra.mxu0 0.0
    %500 = vmatprep.subr.mxu0 0.0
    %501 = vmatpush1.xpose.msra.mxu0 0.0
    %502 = vmatprep.mubr.f32.mxu0 0.0
    %503 = vmatmul.mubr.f32.gmra.mrb[0].mxu0 %v433
    %v504 = vpop.f32.mrb[0].mxu0
    %v505 = vadd.f32 0.0, %v504
    %v506 = vpop.f32.mrb[0].mxu0
    %507 = vdwg.mxu0
    %v508 = vsel %vm355, %v429, -inf
    %509 = vmax.xlane.f32.xlu0 %v508
    %v510 = vpop.xlane.xlu0 %509
    %v511 = vsel %vm355, %v505, -inf
    %512 = vmax.xlane.f32.xlu0 %v511
    %v513 = vpop.xlane.xlu0 %512
    %v514 = vsub.f32 %v429, %v510
    %v515 = vsub.f32 %v505, %v513
    %v516 = vmul.f32 %v514, 1.442695
    %v517 = vpow.pop %v516
    %v518 = vmul.f32 %v515, 1.442695
    %v519 = vpow.pop %v518
    %v520 = vsel %vm355, %v517, 0.0
    %521 = vadd.xlane.f32.xlu0 %v520
    %v522 = vpop.xlane.xlu0 %521
    %v523 = vsel %vm355, %v519, 0.0
    %524 = vadd.xlane.f32.xlu0 %v523
    %v525 = vpop.xlane.xlu0 %524
    %v526 = vrcp.pop %v522
    %v527 = vrcp.pop %v525
    %v528 = vmul.f32 %v517, %v526
    %v529 = vmul.f32 %v519, %v527
    %v531 = vsel %vm355, %v528, 0
    %533 = vmatprep.subr.mxu0 0.0
    %534 = vmatpush1.msra.mxu0 %v347
    %535 = vmatprep.subr.mxu0 0.0
    %536 = vmatpush1.msra.mxu0 0.0
    %537 = vmatprep.subr.mxu0 0.0
    %538 = vmatpush1.msra.mxu0 0.0
    %539 = vmatprep.subr.mxu0 0.0
    %540 = vmatpush1.msra.mxu0 0.0
    %541 = vmatprep.subr.mxu0 0.0
    %542 = vmatpush1.msra.mxu0 0.0
    %543 = vmatprep.subr.mxu0 0.0
    %544 = vmatpush1.msra.mxu0 0.0
    %545 = vmatprep.subr.mxu0 0.0
    %546 = vmatpush1.msra.mxu0 0.0
    %547 = vmatprep.subr.mxu0 0.0
    %548 = vmatpush1.msra.mxu0 0.0
    %549 = vmatprep.subr.mxu0 0.0
    %550 = vmatpush1.msra.mxu0 0.0
    %551 = vmatprep.subr.mxu0 0.0
    %552 = vmatpush1.msra.mxu0 0.0
    %553 = vmatprep.subr.mxu0 0.0
    %554 = vmatpush1.msra.mxu0 0.0
    %555 = vmatprep.subr.mxu0 0.0
    %556 = vmatpush1.msra.mxu0 0.0
    %557 = vmatprep.subr.mxu0 0.0
    %558 = vmatpush1.msra.mxu0 0.0
    %559 = vmatprep.subr.mxu0 0.0
    %560 = vmatpush1.msra.mxu0 0.0
    %561 = vmatprep.subr.mxu0 0.0
    %562 = vmatpush1.msra.mxu0 0.0
    %563 = vmatprep.subr.mxu0 0.0
    %564 = vmatpush1.msra.mxu0 0.0
    %565 = vmatprep.subr.mxu0 0.0
    %566 = vmatpush1.msra.mxu0 0.0
    %567 = vmatprep.subr.mxu0 0.0
    %568 = vmatpush1.msra.mxu0 0.0
    %569 = vmatprep.subr.mxu0 0.0
    %570 = vmatpush1.msra.mxu0 0.0
    %571 = vmatprep.subr.mxu0 0.0
    %572 = vmatpush1.msra.mxu0 0.0
    %573 = vmatprep.subr.mxu0 0.0
    %574 = vmatpush1.msra.mxu0 0.0
    %575 = vmatprep.subr.mxu0 0.0
    %576 = vmatpush1.msra.mxu0 0.0
    %577 = vmatprep.subr.mxu0 0.0
    %578 = vmatpush1.msra.mxu0 0.0
    %579 = vmatprep.subr.mxu0 0.0
    %580 = vmatpush1.msra.mxu0 0.0
    %581 = vmatprep.subr.mxu0 0.0
    %582 = vmatpush1.msra.mxu0 0.0
    %583 = vmatprep.subr.mxu0 0.0
    %584 = vmatpush1.msra.mxu0 0.0
    %585 = vmatprep.subr.mxu0 0.0
    %586 = vmatpush1.msra.mxu0 0.0
    %587 = vmatprep.subr.mxu0 0.0
    %588 = vmatpush1.msra.mxu0 0.0
    %589 = vmatprep.subr.mxu0 0.0
    %590 = vmatpush1.msra.mxu0 0.0
    %591 = vmatprep.subr.mxu0 0.0
    %592 = vmatpush1.msra.mxu0 0.0
    %593 = vmatprep.subr.mxu0 0.0
    %594 = vmatpush1.msra.mxu0 0.0
    %595 = vmatprep.subr.mxu0 0.0
    %596 = vmatpush1.msra.mxu0 0.0
    %597 = vmatprep.mubr.f32.mxu0 0.0
    %598 = vmatmul.mubr.f32.gmra.mrb[0].mxu0 %v531
    %v599 = vpop.f32.mrb[0].mxu0
    %v600 = vadd.f32 0.0, %v599
    %v601 = vpop.f32.mrb[0].mxu0
    %602 = vdwg.mxu0
    %v604 = vsel %vm355, %v529, 0
    %606 = vmatprep.subr.mxu0 0.0
    %607 = vmatpush1.msra.mxu0 %v352
    %608 = vmatprep.subr.mxu0 0.0
    %609 = vmatpush1.msra.mxu0 0.0
    %610 = vmatprep.subr.mxu0 0.0
    %611 = vmatpush1.msra.mxu0 0.0
    %612 = vmatprep.subr.mxu0 0.0
    %613 = vmatpush1.msra.mxu0 0.0
    %614 = vmatprep.subr.mxu0 0.0
    %615 = vmatpush1.msra.mxu0 0.0
    %616 = vmatprep.subr.mxu0 0.0
    %617 = vmatpush1.msra.mxu0 0.0
    %618 = vmatprep.subr.mxu0 0.0
    %619 = vmatpush1.msra.mxu0 0.0
    %620 = vmatprep.subr.mxu0 0.0
    %621 = vmatpush1.msra.mxu0 0.0
    %622 = vmatprep.subr.mxu0 0.0
    %623 = vmatpush1.msra.mxu0 0.0
    %624 = vmatprep.subr.mxu0 0.0
    %625 = vmatpush1.msra.mxu0 0.0
    %626 = vmatprep.subr.mxu0 0.0
    %627 = vmatpush1.msra.mxu0 0.0
    %628 = vmatprep.subr.mxu0 0.0
    %629 = vmatpush1.msra.mxu0 0.0
    %630 = vmatprep.subr.mxu0 0.0
    %631 = vmatpush1.msra.mxu0 0.0
    %632 = vmatprep.subr.mxu0 0.0
    %633 = vmatpush1.msra.mxu0 0.0
    %634 = vmatprep.subr.mxu0 0.0
    %635 = vmatpush1.msra.mxu0 0.0
    %636 = vmatprep.subr.mxu0 0.0
    %637 = vmatpush1.msra.mxu0 0.0
    %638 = vmatprep.subr.mxu0 0.0
    %639 = vmatpush1.msra.mxu0 0.0
    %640 = vmatprep.subr.mxu0 0.0
    %641 = vmatpush1.msra.mxu0 0.0
    %642 = vmatprep.subr.mxu0 0.0
    %643 = vmatpush1.msra.mxu0 0.0
    %644 = vmatprep.subr.mxu0 0.0
    %645 = vmatpush1.msra.mxu0 0.0
    %646 = vmatprep.subr.mxu0 0.0
    %647 = vmatpush1.msra.mxu0 0.0
    %648 = vmatprep.subr.mxu0 0.0
    %649 = vmatpush1.msra.mxu0 0.0
    %650 = vmatprep.subr.mxu0 0.0
    %651 = vmatpush1.msra.mxu0 0.0
    %652 = vmatprep.subr.mxu0 0.0
    %653 = vmatpush1.msra.mxu0 0.0
    %654 = vmatprep.subr.mxu0 0.0
    %655 = vmatpush1.msra.mxu0 0.0
    %656 = vmatprep.subr.mxu0 0.0
    %657 = vmatpush1.msra.mxu0 0.0
    %658 = vmatprep.subr.mxu0 0.0
    %659 = vmatpush1.msra.mxu0 0.0
    %660 = vmatprep.subr.mxu0 0.0
    %661 = vmatpush1.msra.mxu0 0.0
    %662 = vmatprep.subr.mxu0 0.0
    %663 = vmatpush1.msra.mxu0 0.0
    %664 = vmatprep.subr.mxu0 0.0
    %665 = vmatpush1.msra.mxu0 0.0
    %666 = vmatprep.subr.mxu0 0.0
    %667 = vmatpush1.msra.mxu0 0.0
    %668 = vmatprep.subr.mxu0 0.0
    %669 = vmatpush1.msra.mxu0 0.0
    %670 = vmatprep.mubr.f32.mxu0 0.0
    %671 = vmatmul.mubr.f32.gmra.mrb[0].mxu0 %v604
    %v672 = vpop.f32.mrb[0].mxu0
    %v673 = vadd.f32 0.0, %v672
    %v674 = vpop.f32.mrb[0].mxu0
    %675 = vdwg.mxu0
    %v676 = vld [vmem:[#allocation5] sm:$0xff]
    %677 = vrot.lane.b32.xlu0 %v181, 120
    %v678 = vpop.permute.xlu0 %677
    %679 = vrot.lane.b32.xlu0 %v261, 120
    %v680 = vpop.permute.xlu0 %679
    %v681 = vsel %vm355, %v678, 0
    %v683 = vsel %vm355, %v680, 0
    %685 = vmatprep.subr.mxu0 0.0
    %686 = vmatpush1.xpose.msra.mxu0 %v683
    %687 = vmatprep.subr.mxu0 0.0
    %688 = vmatpush1.xpose.msra.mxu0 0.0
    %689 = vmatprep.subr.mxu0 0.0
    %690 = vmatpush1.xpose.msra.mxu0 0.0
    %691 = vmatprep.subr.mxu0 0.0
    %692 = vmatpush1.xpose.msra.mxu0 0.0
    %693 = vmatprep.subr.mxu0 0.0
    %694 = vmatpush1.xpose.msra.mxu0 0.0
    %695 = vmatprep.subr.mxu0 0.0
    %696 = vmatpush1.xpose.msra.mxu0 0.0
    %697 = vmatprep.subr.mxu0 0.0
    %698 = vmatpush1.xpose.msra.mxu0 0.0
    %699 = vmatprep.subr.mxu0 0.0
    %700 = vmatpush1.xpose.msra.mxu0 0.0
    %701 = vmatprep.subr.mxu0 0.0
    %702 = vmatpush1.xpose.msra.mxu0 0.0
    %703 = vmatprep.subr.mxu0 0.0
    %704 = vmatpush1.xpose.msra.mxu0 0.0
    %705 = vmatprep.subr.mxu0 0.0
    %706 = vmatpush1.xpose.msra.mxu0 0.0
    %707 = vmatprep.subr.mxu0 0.0
    %708 = vmatpush1.xpose.msra.mxu0 0.0
    %709 = vmatprep.subr.mxu0 0.0
    %710 = vmatpush1.xpose.msra.mxu0 0.0
    %711 = vmatprep.subr.mxu0 0.0
    %712 = vmatpush1.xpose.msra.mxu0 0.0
    %713 = vmatprep.subr.mxu0 0.0
    %714 = vmatpush1.xpose.msra.mxu0 0.0
    %715 = vmatprep.subr.mxu0 0.0
    %716 = vmatpush1.xpose.msra.mxu0 0.0
    %717 = vmatprep.subr.mxu0 0.0
    %718 = vmatpush1.xpose.msra.mxu0 0.0
    %719 = vmatprep.subr.mxu0 0.0
    %720 = vmatpush1.xpose.msra.mxu0 0.0
    %721 = vmatprep.subr.mxu0 0.0
    %722 = vmatpush1.xpose.msra.mxu0 0.0
    %723 = vmatprep.subr.mxu0 0.0
    %724 = vmatpush1.xpose.msra.mxu0 0.0
    %725 = vmatprep.subr.mxu0 0.0
    %726 = vmatpush1.xpose.msra.mxu0 0.0
    %727 = vmatprep.subr.mxu0 0.0
    %728 = vmatpush1.xpose.msra.mxu0 0.0
    %729 = vmatprep.subr.mxu0 0.0
    %730 = vmatpush1.xpose.msra.mxu0 0.0
    %731 = vmatprep.subr.mxu0 0.0
    %732 = vmatpush1.xpose.msra.mxu0 0.0
    %733 = vmatprep.subr.mxu0 0.0
    %734 = vmatpush1.xpose.msra.mxu0 0.0
    %735 = vmatprep.subr.mxu0 0.0
    %736 = vmatpush1.xpose.msra.mxu0 0.0
    %737 = vmatprep.subr.mxu0 0.0
    %738 = vmatpush1.xpose.msra.mxu0 0.0
    %739 = vmatprep.subr.mxu0 0.0
    %740 = vmatpush1.xpose.msra.mxu0 0.0
    %741 = vmatprep.subr.mxu0 0.0
    %742 = vmatpush1.xpose.msra.mxu0 0.0
    %743 = vmatprep.subr.mxu0 0.0
    %744 = vmatpush1.xpose.msra.mxu0 0.0
    %745 = vmatprep.subr.mxu0 0.0
    %746 = vmatpush1.xpose.msra.mxu0 0.0
    %747 = vmatprep.subr.mxu0 0.0
    %748 = vmatpush1.xpose.msra.mxu0 0.0
    %749 = vmatprep.mubr.f32.mxu0 0.0
    %750 = vmatmul.mubr.f32.gmra.mrb[0].mxu0 %v681
    %v751 = vpop.f32.mrb[0].mxu0
    %v752 = vadd.f32 0.0, %v751
    %v753 = vpop.f32.mrb[0].mxu0
    %754 = vdwg.mxu0
    %755 = vrot.lane.b32.xlu0 %v182, 120
    %v756 = vpop.permute.xlu0 %755
    %757 = vrot.lane.b32.xlu0 %v266, 120
    %v758 = vpop.permute.xlu0 %757
    %v759 = vsel %vm355, %v756, 0
    %v761 = vsel %vm355, %v758, 0
    %763 = vmatprep.subr.mxu0 0.0
    %764 = vmatpush1.xpose.msra.mxu0 %v761
    %765 = vmatprep.subr.mxu0 0.0
    %766 = vmatpush1.xpose.msra.mxu0 0.0
    %767 = vmatprep.subr.mxu0 0.0
    %768 = vmatpush1.xpose.msra.mxu0 0.0
    %769 = vmatprep.subr.mxu0 0.0
    %770 = vmatpush1.xpose.msra.mxu0 0.0
    %771 = vmatprep.subr.mxu0 0.0
    %772 = vmatpush1.xpose.msra.mxu0 0.0
    %773 = vmatprep.subr.mxu0 0.0
    %774 = vmatpush1.xpose.msra.mxu0 0.0
    %775 = vmatprep.subr.mxu0 0.0
    %776 = vmatpush1.xpose.msra.mxu0 0.0
    %777 = vmatprep.subr.mxu0 0.0
    %778 = vmatpush1.xpose.msra.mxu0 0.0
    %779 = vmatprep.subr.mxu0 0.0
    %780 = vmatpush1.xpose.msra.mxu0 0.0
    %781 = vmatprep.subr.mxu0 0.0
    %782 = vmatpush1.xpose.msra.mxu0 0.0
    %783 = vmatprep.subr.mxu0 0.0
    %784 = vmatpush1.xpose.msra.mxu0 0.0
    %785 = vmatprep.subr.mxu0 0.0
    %786 = vmatpush1.xpose.msra.mxu0 0.0
    %787 = vmatprep.subr.mxu0 0.0
    %788 = vmatpush1.xpose.msra.mxu0 0.0
    %789 = vmatprep.subr.mxu0 0.0
    %790 = vmatpush1.xpose.msra.mxu0 0.0
    %791 = vmatprep.subr.mxu0 0.0
    %792 = vmatpush1.xpose.msra.mxu0 0.0
    %793 = vmatprep.subr.mxu0 0.0
    %794 = vmatpush1.xpose.msra.mxu0 0.0
    %795 = vmatprep.subr.mxu0 0.0
    %796 = vmatpush1.xpose.msra.mxu0 0.0
    %797 = vmatprep.subr.mxu0 0.0
    %798 = vmatpush1.xpose.msra.mxu0 0.0
    %799 = vmatprep.subr.mxu0 0.0
    %800 = vmatpush1.xpose.msra.mxu0 0.0
    %801 = vmatprep.subr.mxu0 0.0
    %802 = vmatpush1.xpose.msra.mxu0 0.0
    %803 = vmatprep.subr.mxu0 0.0
    %804 = vmatpush1.xpose.msra.mxu0 0.0
    %805 = vmatprep.subr.mxu0 0.0
    %806 = vmatpush1.xpose.msra.mxu0 0.0
    %807 = vmatprep.subr.mxu0 0.0
    %808 = vmatpush1.xpose.msra.mxu0 0.0
    %809 = vmatprep.subr.mxu0 0.0
    %810 = vmatpush1.xpose.msra.mxu0 0.0
    %811 = vmatprep.subr.mxu0 0.0
    %812 = vmatpush1.xpose.msra.mxu0 0.0
    %813 = vmatprep.subr.mxu0 0.0
    %814 = vmatpush1.xpose.msra.mxu0 0.0
    %815 = vmatprep.subr.mxu0 0.0
    %816 = vmatpush1.xpose.msra.mxu0 0.0
    %817 = vmatprep.subr.mxu0 0.0
    %818 = vmatpush1.xpose.msra.mxu0 0.0
    %819 = vmatprep.subr.mxu0 0.0
    %820 = vmatpush1.xpose.msra.mxu0 0.0
    %821 = vmatprep.subr.mxu0 0.0
    %822 = vmatpush1.xpose.msra.mxu0 0.0
    %823 = vmatprep.subr.mxu0 0.0
    %824 = vmatpush1.xpose.msra.mxu0 0.0
    %825 = vmatprep.subr.mxu0 0.0
    %826 = vmatpush1.xpose.msra.mxu0 0.0
    %827 = vmatprep.mubr.f32.mxu0 0.0
    %828 = vmatmul.mubr.f32.gmra.mrb[0].mxu0 %v759
    %v829 = vpop.f32.mrb[0].mxu0
    %v830 = vadd.f32 0.0, %v829
    %v831 = vpop.f32.mrb[0].mxu0
    %832 = vdwg.mxu0
    %v833 = vsel %vm355, %v752, -inf
    %834 = vmax.xlane.f32.xlu0 %v833
    %v835 = vpop.xlane.xlu0 %834
    %v836 = vsel %vm355, %v830, -inf
    %837 = vmax.xlane.f32.xlu0 %v836
    %v838 = vpop.xlane.xlu0 %837
    %v839 = vsub.f32 %v752, %v835
    %v840 = vsub.f32 %v830, %v838
    %v841 = vmul.f32 %v839, 1.442695
    %v842 = vpow.pop %v841
    %v843 = vmul.f32 %v840, 1.442695
    %v844 = vpow.pop %v843
    %v845 = vsel %vm355, %v842, 0.0
    %846 = vadd.xlane.f32.xlu0 %v845
    %v847 = vpop.xlane.xlu0 %846
    %v848 = vsel %vm355, %v844, 0.0
    %849 = vadd.xlane.f32.xlu0 %v848
    %v850 = vpop.xlane.xlu0 %849
    %v851 = vrcp.pop %v847
    %v852 = vrcp.pop %v850
    %v853 = vmul.f32 %v842, %v851
    %v854 = vmul.f32 %v844, %v852
    %856 = vrot.lane.b32.xlu0 %v347, 120
    %v857 = vpop.permute.xlu0 %856
    %v860 = vsel %vm355, %v853, 0
    %862 = vmatprep.subr.mxu0 0.0
    %863 = vmatpush1.msra.mxu0 %v857
    %864 = vmatprep.subr.mxu0 0.0
    %865 = vmatpush1.msra.mxu0 0.0
    %866 = vmatprep.subr.mxu0 0.0
    %867 = vmatpush1.msra.mxu0 0.0
    %868 = vmatprep.subr.mxu0 0.0
    %869 = vmatpush1.msra.mxu0 0.0
    %870 = vmatprep.subr.mxu0 0.0
    %871 = vmatpush1.msra.mxu0 0.0
    %872 = vmatprep.subr.mxu0 0.0
    %873 = vmatpush1.msra.mxu0 0.0
    %874 = vmatprep.subr.mxu0 0.0
    %875 = vmatpush1.msra.mxu0 0.0
    %876 = vmatprep.subr.mxu0 0.0
    %877 = vmatpush1.msra.mxu0 0.0
    %878 = vmatprep.subr.mxu0 0.0
    %879 = vmatpush1.msra.mxu0 0.0
    %880 = vmatprep.subr.mxu0 0.0
    %881 = vmatpush1.msra.mxu0 0.0
    %882 = vmatprep.subr.mxu0 0.0
    %883 = vmatpush1.msra.mxu0 0.0
    %884 = vmatprep.subr.mxu0 0.0
    %885 = vmatpush1.msra.mxu0 0.0
    %886 = vmatprep.subr.mxu0 0.0
    %887 = vmatpush1.msra.mxu0 0.0
    %888 = vmatprep.subr.mxu0 0.0
    %889 = vmatpush1.msra.mxu0 0.0
    %890 = vmatprep.subr.mxu0 0.0
    %891 = vmatpush1.msra.mxu0 0.0
    %892 = vmatprep.subr.mxu0 0.0
    %893 = vmatpush1.msra.mxu0 0.0
    %894 = vmatprep.subr.mxu0 0.0
    %895 = vmatpush1.msra.mxu0 0.0
    %896 = vmatprep.subr.mxu0 0.0
    %897 = vmatpush1.msra.mxu0 0.0
    %898 = vmatprep.subr.mxu0 0.0
    %899 = vmatpush1.msra.mxu0 0.0
    %900 = vmatprep.subr.mxu0 0.0
    %901 = vmatpush1.msra.mxu0 0.0
    %902 = vmatprep.subr.mxu0 0.0
    %903 = vmatpush1.msra.mxu0 0.0
    %904 = vmatprep.subr.mxu0 0.0
    %905 = vmatpush1.msra.mxu0 0.0
    %906 = vmatprep.subr.mxu0 0.0
    %907 = vmatpush1.msra.mxu0 0.0
    %908 = vmatprep.subr.mxu0 0.0
    %909 = vmatpush1.msra.mxu0 0.0
    %910 = vmatprep.subr.mxu0 0.0
    %911 = vmatpush1.msra.mxu0 0.0
    %912 = vmatprep.subr.mxu0 0.0
    %913 = vmatpush1.msra.mxu0 0.0
    %914 = vmatprep.subr.mxu0 0.0
    %915 = vmatpush1.msra.mxu0 0.0
    %916 = vmatprep.subr.mxu0 0.0
    %917 = vmatpush1.msra.mxu0 0.0
    %918 = vmatprep.subr.mxu0 0.0
    %919 = vmatpush1.msra.mxu0 0.0
    %920 = vmatprep.subr.mxu0 0.0
    %921 = vmatpush1.msra.mxu0 0.0
    %922 = vmatprep.subr.mxu0 0.0
    %923 = vmatpush1.msra.mxu0 0.0
    %924 = vmatprep.subr.mxu0 0.0
    %925 = vmatpush1.msra.mxu0 0.0
    %926 = vmatprep.mubr.f32.mxu0 0.0
    %927 = vmatmul.mubr.f32.gmra.mrb[0].mxu0 %v860
    %v928 = vpop.f32.mrb[0].mxu0
    %v929 = vadd.f32 0.0, %v928
    %v930 = vpop.f32.mrb[0].mxu0
    %931 = vdwg.mxu0
    %933 = vrot.lane.b32.xlu0 %v352, 120
    %v934 = vpop.permute.xlu0 %933
    %v937 = vsel %vm355, %v854, 0
    %939 = vmatprep.subr.mxu0 0.0
    %940 = vmatpush1.msra.mxu0 %v934
    %941 = vmatprep.subr.mxu0 0.0
    %942 = vmatpush1.msra.mxu0 0.0
    %943 = vmatprep.subr.mxu0 0.0
    %944 = vmatpush1.msra.mxu0 0.0
    %945 = vmatprep.subr.mxu0 0.0
    %946 = vmatpush1.msra.mxu0 0.0
    %947 = vmatprep.subr.mxu0 0.0
    %948 = vmatpush1.msra.mxu0 0.0
    %949 = vmatprep.subr.mxu0 0.0
    %950 = vmatpush1.msra.mxu0 0.0
    %951 = vmatprep.subr.mxu0 0.0
    %952 = vmatpush1.msra.mxu0 0.0
    %953 = vmatprep.subr.mxu0 0.0
    %954 = vmatpush1.msra.mxu0 0.0
    %955 = vmatprep.subr.mxu0 0.0
    %956 = vmatpush1.msra.mxu0 0.0
    %957 = vmatprep.subr.mxu0 0.0
    %958 = vmatpush1.msra.mxu0 0.0
    %959 = vmatprep.subr.mxu0 0.0
    %960 = vmatpush1.msra.mxu0 0.0
    %961 = vmatprep.subr.mxu0 0.0
    %962 = vmatpush1.msra.mxu0 0.0
    %963 = vmatprep.subr.mxu0 0.0
    %964 = vmatpush1.msra.mxu0 0.0
    %965 = vmatprep.subr.mxu0 0.0
    %966 = vmatpush1.msra.mxu0 0.0
    %967 = vmatprep.subr.mxu0 0.0
    %968 = vmatpush1.msra.mxu0 0.0
    %969 = vmatprep.subr.mxu0 0.0
    %970 = vmatpush1.msra.mxu0 0.0
    %971 = vmatprep.subr.mxu0 0.0
    %972 = vmatpush1.msra.mxu0 0.0
    %973 = vmatprep.subr.mxu0 0.0
    %974 = vmatpush1.msra.mxu0 0.0
    %975 = vmatprep.subr.mxu0 0.0
    %976 = vmatpush1.msra.mxu0 0.0
    %977 = vmatprep.subr.mxu0 0.0
    %978 = vmatpush1.msra.mxu0 0.0
    %979 = vmatprep.subr.mxu0 0.0
    %980 = vmatpush1.msra.mxu0 0.0
    %981 = vmatprep.subr.mxu0 0.0
    %982 = vmatpush1.msra.mxu0 0.0
    %983 = vmatprep.subr.mxu0 0.0
    %984 = vmatpush1.msra.mxu0 0.0
    %985 = vmatprep.subr.mxu0 0.0
    %986 = vmatpush1.msra.mxu0 0.0
    %987 = vmatprep.subr.mxu0 0.0
    %988 = vmatpush1.msra.mxu0 0.0
    %989 = vmatprep.subr.mxu0 0.0
    %990 = vmatpush1.msra.mxu0 0.0
    %991 = vmatprep.subr.mxu0 0.0
    %992 = vmatpush1.msra.mxu0 0.0
    %993 = vmatprep.subr.mxu0 0.0
    %994 = vmatpush1.msra.mxu0 0.0
    %995 = vmatprep.subr.mxu0 0.0
    %996 = vmatpush1.msra.mxu0 0.0
    %997 = vmatprep.subr.mxu0 0.0
    %998 = vmatpush1.msra.mxu0 0.0
    %999 = vmatprep.subr.mxu0 0.0
    %1000 = vmatpush1.msra.mxu0 0.0
    %1001 = vmatprep.subr.mxu0 0.0
    %1002 = vmatpush1.msra.mxu0 0.0
    %1003 = vmatprep.mubr.f32.mxu0 0.0
    %1004 = vmatmul.mubr.f32.gmra.mrb[0].mxu0 %v937
    %v1005 = vpop.f32.mrb[0].mxu0
    %v1006 = vadd.f32 0.0, %v1005
    %v1007 = vpop.f32.mrb[0].mxu0
    %1008 = vdwg.mxu0
    %v1009 = vld [vmem:[#allocation5 + $0x8] sm:$0xff]
    %v1011 = vsel %vm355, %v929, 0
    %v1014 = vsel %vm355, %v1006, 0
    %1016 = vmatprep.subr.mxu0 0.0
    %1017 = vmatpush1.msra.mxu0 %v1009
    %1018 = vmatprep.subr.mxu0 0.0
    %1019 = vmatpush1.msra.mxu0 0.0
    %1020 = vmatprep.subr.mxu0 0.0
    %1021 = vmatpush1.msra.mxu0 0.0
    %1022 = vmatprep.subr.mxu0 0.0
    %1023 = vmatpush1.msra.mxu0 0.0
    %1024 = vmatprep.subr.mxu0 0.0
    %1025 = vmatpush1.msra.mxu0 0.0
    %1026 = vmatprep.subr.mxu0 0.0
    %1027 = vmatpush1.msra.mxu0 0.0
    %1028 = vmatprep.subr.mxu0 0.0
    %1029 = vmatpush1.msra.mxu0 0.0
    %1030 = vmatprep.subr.mxu0 0.0
    %1031 = vmatpush1.msra.mxu0 0.0
    %1032 = vmatprep.subr.mxu0 0.0
    %1033 = vmatpush1.msra.mxu0 0.0
    %1034 = vmatprep.subr.mxu0 0.0
    %1035 = vmatpush1.msra.mxu0 0.0
    %1036 = vmatprep.subr.mxu0 0.0
    %1037 = vmatpush1.msra.mxu0 0.0
    %1038 = vmatprep.subr.mxu0 0.0
    %1039 = vmatpush1.msra.mxu0 0.0
    %1040 = vmatprep.subr.mxu0 0.0
    %1041 = vmatpush1.msra.mxu0 0.0
    %1042 = vmatprep.subr.mxu0 0.0
    %1043 = vmatpush1.msra.mxu0 0.0
    %1044 = vmatprep.subr.mxu0 0.0
    %1045 = vmatpush1.msra.mxu0 0.0
    %1046 = vmatprep.subr.mxu0 0.0
    %1047 = vmatpush1.msra.mxu0 0.0
    %1048 = vmatprep.subr.mxu0 0.0
    %1049 = vmatpush1.msra.mxu0 0.0
    %1050 = vmatprep.subr.mxu0 0.0
    %1051 = vmatpush1.msra.mxu0 0.0
    %1052 = vmatprep.subr.mxu0 0.0
    %1053 = vmatpush1.msra.mxu0 0.0
    %1054 = vmatprep.subr.mxu0 0.0
    %1055 = vmatpush1.msra.mxu0 0.0
    %1056 = vmatprep.subr.mxu0 0.0
    %1057 = vmatpush1.msra.mxu0 0.0
    %1058 = vmatprep.subr.mxu0 0.0
    %1059 = vmatpush1.msra.mxu0 0.0
    %1060 = vmatprep.subr.mxu0 0.0
    %1061 = vmatpush1.msra.mxu0 0.0
    %1062 = vmatprep.subr.mxu0 0.0
    %1063 = vmatpush1.msra.mxu0 0.0
    %1064 = vmatprep.subr.mxu0 0.0
    %1065 = vmatpush1.msra.mxu0 0.0
    %1066 = vmatprep.subr.mxu0 0.0
    %1067 = vmatpush1.msra.mxu0 0.0
    %1068 = vmatprep.subr.mxu0 0.0
    %1069 = vmatpush1.msra.mxu0 0.0
    %1070 = vmatprep.subr.mxu0 0.0
    %1071 = vmatpush1.msra.mxu0 0.0
    %1072 = vmatprep.subr.mxu0 0.0
    %1073 = vmatpush1.msra.mxu0 0.0
    %1074 = vmatprep.subr.mxu0 0.0
    %1075 = vmatpush1.msra.mxu0 0.0
    %1076 = vmatprep.subr.mxu0 0.0
    %1077 = vmatpush1.msra.mxu0 0.0
    %1078 = vmatprep.subr.mxu0 0.0
    %1079 = vmatpush1.msra.mxu0 0.0
    %1080 = vmatprep.mubr.f32.mxu0 0.0
    %1081 = vmatmul.mubr.f32.gmra.mrb[0].mxu0 %v1011
    %v1082 = vpop.f32.mrb[0].mxu0
    %v1083 = vadd.f32 0.0, %v1082
    %v1084 = vpop.f32.mrb[0].mxu0
    %1085 = vmatprep.mubr.f32.mxu0 0.0
    %1086 = vmatmul.mubr.f32.gmra.mrb[0].mxu0 %v1014
    %v1087 = vpop.f32.mrb[0].mxu0
    %v1088 = vadd.f32 0.0, %v1087
    %v1089 = vpop.f32.mrb[0].mxu0
    %1090 = vdwg.mxu0
    %v1092 = vsel %vm355, %v600, 0
    %v1095 = vsel %vm355, %v673, 0
    %1097 = vmatprep.subr.mxu0 0.0
    %1098 = vmatpush1.msra.mxu0 %v676
    %1099 = vmatprep.subr.mxu0 0.0
    %1100 = vmatpush1.msra.mxu0 0.0
    %1101 = vmatprep.subr.mxu0 0.0
    %1102 = vmatpush1.msra.mxu0 0.0
    %1103 = vmatprep.subr.mxu0 0.0
    %1104 = vmatpush1.msra.mxu0 0.0
    %1105 = vmatprep.subr.mxu0 0.0
    %1106 = vmatpush1.msra.mxu0 0.0
    %1107 = vmatprep.subr.mxu0 0.0
    %1108 = vmatpush1.msra.mxu0 0.0
    %1109 = vmatprep.subr.mxu0 0.0
    %1110 = vmatpush1.msra.mxu0 0.0
    %1111 = vmatprep.subr.mxu0 0.0
    %1112 = vmatpush1.msra.mxu0 0.0
    %1113 = vmatprep.subr.mxu0 0.0
    %1114 = vmatpush1.msra.mxu0 0.0
    %1115 = vmatprep.subr.mxu0 0.0
    %1116 = vmatpush1.msra.mxu0 0.0
    %1117 = vmatprep.subr.mxu0 0.0
    %1118 = vmatpush1.msra.mxu0 0.0
    %1119 = vmatprep.subr.mxu0 0.0
    %1120 = vmatpush1.msra.mxu0 0.0
    %1121 = vmatprep.subr.mxu0 0.0
    %1122 = vmatpush1.msra.mxu0 0.0
    %1123 = vmatprep.subr.mxu0 0.0
    %1124 = vmatpush1.msra.mxu0 0.0
    %1125 = vmatprep.subr.mxu0 0.0
    %1126 = vmatpush1.msra.mxu0 0.0
    %1127 = vmatprep.subr.mxu0 0.0
    %1128 = vmatpush1.msra.mxu0 0.0
    %1129 = vmatprep.subr.mxu0 0.0
    %1130 = vmatpush1.msra.mxu0 0.0
    %1131 = vmatprep.subr.mxu0 0.0
    %1132 = vmatpush1.msra.mxu0 0.0
    %1133 = vmatprep.subr.mxu0 0.0
    %1134 = vmatpush1.msra.mxu0 0.0
    %1135 = vmatprep.subr.mxu0 0.0
    %1136 = vmatpush1.msra.mxu0 0.0
    %1137 = vmatprep.subr.mxu0 0.0
    %1138 = vmatpush1.msra.mxu0 0.0
    %1139 = vmatprep.subr.mxu0 0.0
    %1140 = vmatpush1.msra.mxu0 0.0
    %1141 = vmatprep.subr.mxu0 0.0
    %1142 = vmatpush1.msra.mxu0 0.0
    %1143 = vmatprep.subr.mxu0 0.0
    %1144 = vmatpush1.msra.mxu0 0.0
    %1145 = vmatprep.subr.mxu0 0.0
    %1146 = vmatpush1.msra.mxu0 0.0
    %1147 = vmatprep.subr.mxu0 0.0
    %1148 = vmatpush1.msra.mxu0 0.0
    %1149 = vmatprep.subr.mxu0 0.0
    %1150 = vmatpush1.msra.mxu0 0.0
    %1151 = vmatprep.subr.mxu0 0.0
    %1152 = vmatpush1.msra.mxu0 0.0
    %1153 = vmatprep.subr.mxu0 0.0
    %1154 = vmatpush1.msra.mxu0 0.0
    %1155 = vmatprep.subr.mxu0 0.0
    %1156 = vmatpush1.msra.mxu0 0.0
    %1157 = vmatprep.subr.mxu0 0.0
    %1158 = vmatpush1.msra.mxu0 0.0
    %1159 = vmatprep.subr.mxu0 0.0
    %1160 = vmatpush1.msra.mxu0 0.0
    %1161 = vmatprep.mubr.f32.mxu0 0.0
    %1162 = vmatmul.mubr.f32.gmra.mrb[0].mxu0 %v1092
    %v1163 = vpop.f32.mrb[0].mxu0
    %v1164 = vadd.f32 %v1083, %v1163
    %v1165 = vpop.f32.mrb[0].mxu0
    %1166 = vmatprep.mubr.f32.mxu0 0.0
    %1167 = vmatmul.mubr.f32.gmra.mrb[0].mxu0 %v1095
    %v1168 = vpop.f32.mrb[0].mxu0
    %v1169 = vadd.f32 %v1088, %v1168
    %v1170 = vpop.f32.mrb[0].mxu0
    %1171 = vdwg.mxu0
    %1172 = vrot.lane.b32.xlu0 %v181, 112
    %v1173 = vpop.permute.xlu0 %1172
    %1174 = vrot.lane.b32.xlu0 %v261, 112
    %v1175 = vpop.permute.xlu0 %1174
    %v1176 = vsel %vm355, %v1173, 0
    %v1178 = vsel %vm355, %v1175, 0
    %1180 = vmatprep.subr.mxu0 0.0
    %1181 = vmatpush1.xpose.msra.mxu0 %v1178
    %1182 = vmatprep.subr.mxu0 0.0
    %1183 = vmatpush1.xpose.msra.mxu0 0.0
    %1184 = vmatprep.subr.mxu0 0.0
    %1185 = vmatpush1.xpose.msra.mxu0 0.0
    %1186 = vmatprep.subr.mxu0 0.0
    %1187 = vmatpush1.xpose.msra.mxu0 0.0
    %1188 = vmatprep.subr.mxu0 0.0
    %1189 = vmatpush1.xpose.msra.mxu0 0.0
    %1190 = vmatprep.subr.mxu0 0.0
    %1191 = vmatpush1.xpose.msra.mxu0 0.0
    %1192 = vmatprep.subr.mxu0 0.0
    %1193 = vmatpush1.xpose.msra.mxu0 0.0
    %1194 = vmatprep.subr.mxu0 0.0
    %1195 = vmatpush1.xpose.msra.mxu0 0.0
    %1196 = vmatprep.subr.mxu0 0.0
    %1197 = vmatpush1.xpose.msra.mxu0 0.0
    %1198 = vmatprep.subr.mxu0 0.0
    %1199 = vmatpush1.xpose.msra.mxu0 0.0
    %1200 = vmatprep.subr.mxu0 0.0
    %1201 = vmatpush1.xpose.msra.mxu0 0.0
    %1202 = vmatprep.subr.mxu0 0.0
    %1203 = vmatpush1.xpose.msra.mxu0 0.0
    %1204 = vmatprep.subr.mxu0 0.0
    %1205 = vmatpush1.xpose.msra.mxu0 0.0
    %1206 = vmatprep.subr.mxu0 0.0
    %1207 = vmatpush1.xpose.msra.mxu0 0.0
    %1208 = vmatprep.subr.mxu0 0.0
    %1209 = vmatpush1.xpose.msra.mxu0 0.0
    %1210 = vmatprep.subr.mxu0 0.0
    %1211 = vmatpush1.xpose.msra.mxu0 0.0
    %1212 = vmatprep.subr.mxu0 0.0
    %1213 = vmatpush1.xpose.msra.mxu0 0.0
    %1214 = vmatprep.subr.mxu0 0.0
    %1215 = vmatpush1.xpose.msra.mxu0 0.0
    %1216 = vmatprep.subr.mxu0 0.0
    %1217 = vmatpush1.xpose.msra.mxu0 0.0
    %1218 = vmatprep.subr.mxu0 0.0
    %1219 = vmatpush1.xpose.msra.mxu0 0.0
    %1220 = vmatprep.subr.mxu0 0.0
    %1221 = vmatpush1.xpose.msra.mxu0 0.0
    %1222 = vmatprep.subr.mxu0 0.0
    %1223 = vmatpush1.xpose.msra.mxu0 0.0
    %1224 = vmatprep.subr.mxu0 0.0
    %1225 = vmatpush1.xpose.msra.mxu0 0.0
    %1226 = vmatprep.subr.mxu0 0.0
    %1227 = vmatpush1.xpose.msra.mxu0 0.0
    %1228 = vmatprep.subr.mxu0 0.0
    %1229 = vmatpush1.xpose.msra.mxu0 0.0
    %1230 = vmatprep.subr.mxu0 0.0
    %1231 = vmatpush1.xpose.msra.mxu0 0.0
    %1232 = vmatprep.subr.mxu0 0.0
    %1233 = vmatpush1.xpose.msra.mxu0 0.0
    %1234 = vmatprep.subr.mxu0 0.0
    %1235 = vmatpush1.xpose.msra.mxu0 0.0
    %1236 = vmatprep.subr.mxu0 0.0
    %1237 = vmatpush1.xpose.msra.mxu0 0.0
    %1238 = vmatprep.subr.mxu0 0.0
    %1239 = vmatpush1.xpose.msra.mxu0 0.0
    %1240 = vmatprep.subr.mxu0 0.0
    %1241 = vmatpush1.xpose.msra.mxu0 0.0
    %1242 = vmatprep.subr.mxu0 0.0
    %1243 = vmatpush1.xpose.msra.mxu0 0.0
    %1244 = vmatprep.mubr.f32.mxu0 0.0
    %1245 = vmatmul.mubr.f32.gmra.mrb[0].mxu0 %v1176
    %v1246 = vpop.f32.mrb[0].mxu0
    %v1247 = vadd.f32 0.0, %v1246
    %v1248 = vpop.f32.mrb[0].mxu0
    %1249 = vdwg.mxu0
    %1250 = vrot.lane.b32.xlu0 %v182, 112
    %v1251 = vpop.permute.xlu0 %1250
    %1252 = vrot.lane.b32.xlu0 %v266, 112
    %v1253 = vpop.permute.xlu0 %1252
    %v1254 = vsel %vm355, %v1251, 0
    %v1256 = vsel %vm355, %v1253, 0
    %1258 = vmatprep.subr.mxu0 0.0
    %1259 = vmatpush1.xpose.msra.mxu0 %v1256
    %1260 = vmatprep.subr.mxu0 0.0
    %1261 = vmatpush1.xpose.msra.mxu0 0.0
    %1262 = vmatprep.subr.mxu0 0.0
    %1263 = vmatpush1.xpose.msra.mxu0 0.0
    %1264 = vmatprep.subr.mxu0 0.0
    %1265 = vmatpush1.xpose.msra.mxu0 0.0
    %1266 = vmatprep.subr.mxu0 0.0
    %1267 = vmatpush1.xpose.msra.mxu0 0.0
    %1268 = vmatprep.subr.mxu0 0.0
    %1269 = vmatpush1.xpose.msra.mxu0 0.0
    %1270 = vmatprep.subr.mxu0 0.0
    %1271 = vmatpush1.xpose.msra.mxu0 0.0
    %1272 = vmatprep.subr.mxu0 0.0
    %1273 = vmatpush1.xpose.msra.mxu0 0.0
    %1274 = vmatprep.subr.mxu0 0.0
    %1275 = vmatpush1.xpose.msra.mxu0 0.0
    %1276 = vmatprep.subr.mxu0 0.0
    %1277 = vmatpush1.xpose.msra.mxu0 0.0
    %1278 = vmatprep.subr.mxu0 0.0
    %1279 = vmatpush1.xpose.msra.mxu0 0.0
    %1280 = vmatprep.subr.mxu0 0.0
    %1281 = vmatpush1.xpose.msra.mxu0 0.0
    %1282 = vmatprep.subr.mxu0 0.0
    %1283 = vmatpush1.xpose.msra.mxu0 0.0
    %1284 = vmatprep.subr.mxu0 0.0
    %1285 = vmatpush1.xpose.msra.mxu0 0.0
    %1286 = vmatprep.subr.mxu0 0.0
    %1287 = vmatpush1.xpose.msra.mxu0 0.0
    %1288 = vmatprep.subr.mxu0 0.0
    %1289 = vmatpush1.xpose.msra.mxu0 0.0
    %1290 = vmatprep.subr.mxu0 0.0
    %1291 = vmatpush1.xpose.msra.mxu0 0.0
    %1292 = vmatprep.subr.mxu0 0.0
    %1293 = vmatpush1.xpose.msra.mxu0 0.0
    %1294 = vmatprep.subr.mxu0 0.0
    %1295 = vmatpush1.xpose.msra.mxu0 0.0
    %1296 = vmatprep.subr.mxu0 0.0
    %1297 = vmatpush1.xpose.msra.mxu0 0.0
    %1298 = vmatprep.subr.mxu0 0.0
    %1299 = vmatpush1.xpose.msra.mxu0 0.0
    %1300 = vmatprep.subr.mxu0 0.0
    %1301 = vmatpush1.xpose.msra.mxu0 0.0
    %1302 = vmatprep.subr.mxu0 0.0
    %1303 = vmatpush1.xpose.msra.mxu0 0.0
    %1304 = vmatprep.subr.mxu0 0.0
    %1305 = vmatpush1.xpose.msra.mxu0 0.0
    %1306 = vmatprep.subr.mxu0 0.0
    %1307 = vmatpush1.xpose.msra.mxu0 0.0
    %1308 = vmatprep.subr.mxu0 0.0
    %1309 = vmatpush1.xpose.msra.mxu0 0.0
    %1310 = vmatprep.subr.mxu0 0.0
    %1311 = vmatpush1.xpose.msra.mxu0 0.0
    %1312 = vmatprep.subr.mxu0 0.0
    %1313 = vmatpush1.xpose.msra.mxu0 0.0
    %1314 = vmatprep.subr.mxu0 0.0
    %1315 = vmatpush1.xpose.msra.mxu0 0.0
    %1316 = vmatprep.subr.mxu0 0.0
    %1317 = vmatpush1.xpose.msra.mxu0 0.0
    %1318 = vmatprep.subr.mxu0 0.0
    %1319 = vmatpush1.xpose.msra.mxu0 0.0
    %1320 = vmatprep.subr.mxu0 0.0
    %1321 = vmatpush1.xpose.msra.mxu0 0.0
    %1322 = vmatprep.mubr.f32.mxu0 0.0
    %1323 = vmatmul.mubr.f32.gmra.mrb[0].mxu0 %v1254
    %v1324 = vpop.f32.mrb[0].mxu0
    %v1325 = vadd.f32 0.0, %v1324
    %v1326 = vpop.f32.mrb[0].mxu0
    %1327 = vdwg.mxu0
    %v1328 = vsel %vm355, %v1247, -inf
    %1329 = vmax.xlane.f32.xlu0 %v1328
    %v1330 = vpop.xlane.xlu0 %1329
    %v1331 = vsel %vm355, %v1325, -inf
    %1332 = vmax.xlane.f32.xlu0 %v1331
    %v1333 = vpop.xlane.xlu0 %1332
    %v1334 = vsub.f32 %v1247, %v1330
    %v1335 = vsub.f32 %v1325, %v1333
    %v1336 = vmul.f32 %v1334, 1.442695
    %v1337 = vpow.pop %v1336
    %v1338 = vmul.f32 %v1335, 1.442695
    %v1339 = vpow.pop %v1338
    %v1340 = vsel %vm355, %v1337, 0.0
    %1341 = vadd.xlane.f32.xlu0 %v1340
    %v1342 = vpop.xlane.xlu0 %1341
    %v1343 = vsel %vm355, %v1339, 0.0
    %1344 = vadd.xlane.f32.xlu0 %v1343
    %v1345 = vpop.xlane.xlu0 %1344
    %v1346 = vrcp.pop %v1342
    %v1347 = vrcp.pop %v1345
    %v1348 = vmul.f32 %v1337, %v1346
    %v1349 = vmul.f32 %v1339, %v1347
    %1350 = vrot.lane.b32.xlu0 %v347, 112
    %v1351 = vpop.permute.xlu0 %1350
    %v1354 = vsel %vm355, %v1348, 0
    %1356 = vmatprep.subr.mxu0 0.0
    %1357 = vmatpush1.msra.mxu0 %v1351
    %1358 = vmatprep.subr.mxu0 0.0
    %1359 = vmatpush1.msra.mxu0 0.0
    %1360 = vmatprep.subr.mxu0 0.0
    %1361 = vmatpush1.msra.mxu0 0.0
    %1362 = vmatprep.subr.mxu0 0.0
    %1363 = vmatpush1.msra.mxu0 0.0
    %1364 = vmatprep.subr.mxu0 0.0
    %1365 = vmatpush1.msra.mxu0 0.0
    %1366 = vmatprep.subr.mxu0 0.0
    %1367 = vmatpush1.msra.mxu0 0.0
    %1368 = vmatprep.subr.mxu0 0.0
    %1369 = vmatpush1.msra.mxu0 0.0
    %1370 = vmatprep.subr.mxu0 0.0
    %1371 = vmatpush1.msra.mxu0 0.0
    %1372 = vmatprep.subr.mxu0 0.0
    %1373 = vmatpush1.msra.mxu0 0.0
    %1374 = vmatprep.subr.mxu0 0.0
    %1375 = vmatpush1.msra.mxu0 0.0
    %1376 = vmatprep.subr.mxu0 0.0
    %1377 = vmatpush1.msra.mxu0 0.0
    %1378 = vmatprep.subr.mxu0 0.0
    %1379 = vmatpush1.msra.mxu0 0.0
    %1380 = vmatprep.subr.mxu0 0.0
    %1381 = vmatpush1.msra.mxu0 0.0
    %1382 = vmatprep.subr.mxu0 0.0
    %1383 = vmatpush1.msra.mxu0 0.0
    %1384 = vmatprep.subr.mxu0 0.0
    %1385 = vmatpush1.msra.mxu0 0.0
    %1386 = vmatprep.subr.mxu0 0.0
    %1387 = vmatpush1.msra.mxu0 0.0
    %1388 = vmatprep.subr.mxu0 0.0
    %1389 = vmatpush1.msra.mxu0 0.0
    %1390 = vmatprep.subr.mxu0 0.0
    %1391 = vmatpush1.msra.mxu0 0.0
    %1392 = vmatprep.subr.mxu0 0.0
    %1393 = vmatpush1.msra.mxu0 0.0
    %1394 = vmatprep.subr.mxu0 0.0
    %1395 = vmatpush1.msra.mxu0 0.0
    %1396 = vmatprep.subr.mxu0 0.0
    %1397 = vmatpush1.msra.mxu0 0.0
    %1398 = vmatprep.subr.mxu0 0.0
    %1399 = vmatpush1.msra.mxu0 0.0
    %1400 = vmatprep.subr.mxu0 0.0
    %1401 = vmatpush1.msra.mxu0 0.0
    %1402 = vmatprep.subr.mxu0 0.0
    %1403 = vmatpush1.msra.mxu0 0.0
    %1404 = vmatprep.subr.mxu0 0.0
    %1405 = vmatpush1.msra.mxu0 0.0
    %1406 = vmatprep.subr.mxu0 0.0
    %1407 = vmatpush1.msra.mxu0 0.0
    %1408 = vmatprep.subr.mxu0 0.0
    %1409 = vmatpush1.msra.mxu0 0.0
    %1410 = vmatprep.subr.mxu0 0.0
    %1411 = vmatpush1.msra.mxu0 0.0
    %1412 = vmatprep.subr.mxu0 0.0
    %1413 = vmatpush1.msra.mxu0 0.0
    %1414 = vmatprep.subr.mxu0 0.0
    %1415 = vmatpush1.msra.mxu0 0.0
    %1416 = vmatprep.subr.mxu0 0.0
    %1417 = vmatpush1.msra.mxu0 0.0
    %1418 = vmatprep.subr.mxu0 0.0
    %1419 = vmatpush1.msra.mxu0 0.0
    %1420 = vmatprep.mubr.f32.mxu0 0.0
    %1421 = vmatmul.mubr.f32.gmra.mrb[0].mxu0 %v1354
    %v1422 = vpop.f32.mrb[0].mxu0
    %v1423 = vadd.f32 0.0, %v1422
    %v1424 = vpop.f32.mrb[0].mxu0
    %1425 = vdwg.mxu0
    %1426 = vrot.lane.b32.xlu0 %v352, 112
    %v1427 = vpop.permute.xlu0 %1426
    %v1430 = vsel %vm355, %v1349, 0
    %1432 = vmatprep.subr.mxu0 0.0
    %1433 = vmatpush1.msra.mxu0 %v1427
    %1434 = vmatprep.subr.mxu0 0.0
    %1435 = vmatpush1.msra.mxu0 0.0
    %1436 = vmatprep.subr.mxu0 0.0
    %1437 = vmatpush1.msra.mxu0 0.0
    %1438 = vmatprep.subr.mxu0 0.0
    %1439 = vmatpush1.msra.mxu0 0.0
    %1440 = vmatprep.subr.mxu0 0.0
    %1441 = vmatpush1.msra.mxu0 0.0
    %1442 = vmatprep.subr.mxu0 0.0
    %1443 = vmatpush1.msra.mxu0 0.0
    %1444 = vmatprep.subr.mxu0 0.0
    %1445 = vmatpush1.msra.mxu0 0.0
    %1446 = vmatprep.subr.mxu0 0.0
    %1447 = vmatpush1.msra.mxu0 0.0
    %1448 = vmatprep.subr.mxu0 0.0
    %1449 = vmatpush1.msra.mxu0 0.0
    %1450 = vmatprep.subr.mxu0 0.0
    %1451 = vmatpush1.msra.mxu0 0.0
    %1452 = vmatprep.subr.mxu0 0.0
    %1453 = vmatpush1.msra.mxu0 0.0
    %1454 = vmatprep.subr.mxu0 0.0
    %1455 = vmatpush1.msra.mxu0 0.0
    %1456 = vmatprep.subr.mxu0 0.0
    %1457 = vmatpush1.msra.mxu0 0.0
    %1458 = vmatprep.subr.mxu0 0.0
    %1459 = vmatpush1.msra.mxu0 0.0
    %1460 = vmatprep.subr.mxu0 0.0
    %1461 = vmatpush1.msra.mxu0 0.0
    %1462 = vmatprep.subr.mxu0 0.0
    %1463 = vmatpush1.msra.mxu0 0.0
    %1464 = vmatprep.subr.mxu0 0.0
    %1465 = vmatpush1.msra.mxu0 0.0
    %1466 = vmatprep.subr.mxu0 0.0
    %1467 = vmatpush1.msra.mxu0 0.0
    %1468 = vmatprep.subr.mxu0 0.0
    %1469 = vmatpush1.msra.mxu0 0.0
    %1470 = vmatprep.subr.mxu0 0.0
    %1471 = vmatpush1.msra.mxu0 0.0
    %1472 = vmatprep.subr.mxu0 0.0
    %1473 = vmatpush1.msra.mxu0 0.0
    %1474 = vmatprep.subr.mxu0 0.0
    %1475 = vmatpush1.msra.mxu0 0.0
    %1476 = vmatprep.subr.mxu0 0.0
    %1477 = vmatpush1.msra.mxu0 0.0
    %1478 = vmatprep.subr.mxu0 0.0
    %1479 = vmatpush1.msra.mxu0 0.0
    %1480 = vmatprep.subr.mxu0 0.0
    %1481 = vmatpush1.msra.mxu0 0.0
    %1482 = vmatprep.subr.mxu0 0.0
    %1483 = vmatpush1.msra.mxu0 0.0
    %1484 = vmatprep.subr.mxu0 0.0
    %1485 = vmatpush1.msra.mxu0 0.0
    %1486 = vmatprep.subr.mxu0 0.0
    %1487 = vmatpush1.msra.mxu0 0.0
    %1488 = vmatprep.subr.mxu0 0.0
    %1489 = vmatpush1.msra.mxu0 0.0
    %1490 = vmatprep.subr.mxu0 0.0
    %1491 = vmatpush1.msra.mxu0 0.0
    %1492 = vmatprep.subr.mxu0 0.0
    %1493 = vmatpush1.msra.mxu0 0.0
    %1494 = vmatprep.subr.mxu0 0.0
    %1495 = vmatpush1.msra.mxu0 0.0
    %1496 = vmatprep.mubr.f32.mxu0 0.0
    %1497 = vmatmul.mubr.f32.gmra.mrb[0].mxu0 %v1430
    %v1498 = vpop.f32.mrb[0].mxu0
    %v1499 = vadd.f32 0.0, %v1498
    %v1500 = vpop.f32.mrb[0].mxu0
    %1501 = vdwg.mxu0
    %v1502 = vld [vmem:[#allocation5 + $0x10] sm:$0xff]
    %v1504 = vsel %vm355, %v1423, 0
    %v1507 = vsel %vm355, %v1499, 0
    %1509 = vmatprep.subr.mxu0 0.0
    %1510 = vmatpush1.msra.mxu0 %v1502
    %1511 = vmatprep.subr.mxu0 0.0
    %1512 = vmatpush1.msra.mxu0 0.0
    %1513 = vmatprep.subr.mxu0 0.0
    %1514 = vmatpush1.msra.mxu0 0.0
    %1515 = vmatprep.subr.mxu0 0.0
    %1516 = vmatpush1.msra.mxu0 0.0
    %1517 = vmatprep.subr.mxu0 0.0
    %1518 = vmatpush1.msra.mxu0 0.0
    %1519 = vmatprep.subr.mxu0 0.0
    %1520 = vmatpush1.msra.mxu0 0.0
    %1521 = vmatprep.subr.mxu0 0.0
    %1522 = vmatpush1.msra.mxu0 0.0
    %1523 = vmatprep.subr.mxu0 0.0
    %1524 = vmatpush1.msra.mxu0 0.0
    %1525 = vmatprep.subr.mxu0 0.0
    %1526 = vmatpush1.msra.mxu0 0.0
    %1527 = vmatprep.subr.mxu0 0.0
    %1528 = vmatpush1.msra.mxu0 0.0
    %1529 = vmatprep.subr.mxu0 0.0
    %1530 = vmatpush1.msra.mxu0 0.0
    %1531 = vmatprep.subr.mxu0 0.0
    %1532 = vmatpush1.msra.mxu0 0.0
    %1533 = vmatprep.subr.mxu0 0.0
    %1534 = vmatpush1.msra.mxu0 0.0
    %1535 = vmatprep.subr.mxu0 0.0
    %1536 = vmatpush1.msra.mxu0 0.0
    %1537 = vmatprep.subr.mxu0 0.0
    %1538 = vmatpush1.msra.mxu0 0.0
    %1539 = vmatprep.subr.mxu0 0.0
    %1540 = vmatpush1.msra.mxu0 0.0
    %1541 = vmatprep.subr.mxu0 0.0
    %1542 = vmatpush1.msra.mxu0 0.0
    %1543 = vmatprep.subr.mxu0 0.0
    %1544 = vmatpush1.msra.mxu0 0.0
    %1545 = vmatprep.subr.mxu0 0.0
    %1546 = vmatpush1.msra.mxu0 0.0
    %1547 = vmatprep.subr.mxu0 0.0
    %1548 = vmatpush1.msra.mxu0 0.0
    %1549 = vmatprep.subr.mxu0 0.0
    %1550 = vmatpush1.msra.mxu0 0.0
    %1551 = vmatprep.subr.mxu0 0.0
    %1552 = vmatpush1.msra.mxu0 0.0
    %1553 = vmatprep.subr.mxu0 0.0
    %1554 = vmatpush1.msra.mxu0 0.0
    %1555 = vmatprep.subr.mxu0 0.0
    %1556 = vmatpush1.msra.mxu0 0.0
    %1557 = vmatprep.subr.mxu0 0.0
    %1558 = vmatpush1.msra.mxu0 0.0
    %1559 = vmatprep.subr.mxu0 0.0
    %1560 = vmatpush1.msra.mxu0 0.0
    %1561 = vmatprep.subr.mxu0 0.0
    %1562 = vmatpush1.msra.mxu0 0.0
    %1563 = vmatprep.subr.mxu0 0.0
    %1564 = vmatpush1.msra.mxu0 0.0
    %1565 = vmatprep.subr.mxu0 0.0
    %1566 = vmatpush1.msra.mxu0 0.0
    %1567 = vmatprep.subr.mxu0 0.0
    %1568 = vmatpush1.msra.mxu0 0.0
    %1569 = vmatprep.subr.mxu0 0.0
    %1570 = vmatpush1.msra.mxu0 0.0
    %1571 = vmatprep.subr.mxu0 0.0
    %1572 = vmatpush1.msra.mxu0 0.0
    %1573 = vmatprep.mubr.f32.mxu0 0.0
    %1574 = vmatmul.mubr.f32.gmra.mrb[0].mxu0 %v1504
    %v1575 = vpop.f32.mrb[0].mxu0
    %v1576 = vadd.f32 0.0, %v1575
    %v1577 = vpop.f32.mrb[0].mxu0
    %1578 = vmatprep.mubr.f32.mxu0 0.0
    %1579 = vmatmul.mubr.f32.gmra.mrb[0].mxu0 %v1507
    %v1580 = vpop.f32.mrb[0].mxu0
    %v1581 = vadd.f32 0.0, %v1580
    %v1582 = vpop.f32.mrb[0].mxu0
    %1583 = vdwg.mxu0
    %v1584 = vadd.f32 %v1164, %v1576
    %v1585 = vadd.f32 %v1169, %v1581
    %1586 = vrot.lane.b32.xlu0 %v181, 104
    %v1587 = vpop.permute.xlu0 %1586
    %1588 = vrot.lane.b32.xlu0 %v261, 104
    %v1589 = vpop.permute.xlu0 %1588
    %v1590 = vsel %vm355, %v1587, 0
    %v1592 = vsel %vm355, %v1589, 0
    %1594 = vmatprep.subr.mxu0 0.0
    %1595 = vmatpush1.xpose.msra.mxu0 %v1592
    %1596 = vmatprep.subr.mxu0 0.0
    %1597 = vmatpush1.xpose.msra.mxu0 0.0
    %1598 = vmatprep.subr.mxu0 0.0
    %1599 = vmatpush1.xpose.msra.mxu0 0.0
    %1600 = vmatprep.subr.mxu0 0.0
    %1601 = vmatpush1.xpose.msra.mxu0 0.0
    %1602 = vmatprep.subr.mxu0 0.0
    %1603 = vmatpush1.xpose.msra.mxu0 0.0
    %1604 = vmatprep.subr.mxu0 0.0
    %1605 = vmatpush1.xpose.msra.mxu0 0.0
    %1606 = vmatprep.subr.mxu0 0.0
    %1607 = vmatpush1.xpose.msra.mxu0 0.0
    %1608 = vmatprep.subr.mxu0 0.0
    %1609 = vmatpush1.xpose.msra.mxu0 0.0
    %1610 = vmatprep.subr.mxu0 0.0
    %1611 = vmatpush1.xpose.msra.mxu0 0.0
    %1612 = vmatprep.subr.mxu0 0.0
    %1613 = vmatpush1.xpose.msra.mxu0 0.0
    %1614 = vmatprep.subr.mxu0 0.0
    %1615 = vmatpush1.xpose.msra.mxu0 0.0
    %1616 = vmatprep.subr.mxu0 0.0
    %1617 = vmatpush1.xpose.msra.mxu0 0.0
    %1618 = vmatprep.subr.mxu0 0.0
    %1619 = vmatpush1.xpose.msra.mxu0 0.0
    %1620 = vmatprep.subr.mxu0 0.0
    %1621 = vmatpush1.xpose.msra.mxu0 0.0
    %1622 = vmatprep.subr.mxu0 0.0
    %1623 = vmatpush1.xpose.msra.mxu0 0.0
    %1624 = vmatprep.subr.mxu0 0.0
    %1625 = vmatpush1.xpose.msra.mxu0 0.0
    %1626 = vmatprep.subr.mxu0 0.0
    %1627 = vmatpush1.xpose.msra.mxu0 0.0
    %1628 = vmatprep.subr.mxu0 0.0
    %1629 = vmatpush1.xpose.msra.mxu0 0.0
    %1630 = vmatprep.subr.mxu0 0.0
    %1631 = vmatpush1.xpose.msra.mxu0 0.0
    %1632 = vmatprep.subr.mxu0 0.0
    %1633 = vmatpush1.xpose.msra.mxu0 0.0
    %1634 = vmatprep.subr.mxu0 0.0
    %1635 = vmatpush1.xpose.msra.mxu0 0.0
    %1636 = vmatprep.subr.mxu0 0.0
    %1637 = vmatpush1.xpose.msra.mxu0 0.0
    %1638 = vmatprep.subr.mxu0 0.0
    %1639 = vmatpush1.xpose.msra.mxu0 0.0
    %1640 = vmatprep.subr.mxu0 0.0
    %1641 = vmatpush1.xpose.msra.mxu0 0.0
    %1642 = vmatprep.subr.mxu0 0.0
    %1643 = vmatpush1.xpose.msra.mxu0 0.0
    %1644 = vmatprep.subr.mxu0 0.0
    %1645 = vmatpush1.xpose.msra.mxu0 0.0
    %1646 = vmatprep.subr.mxu0 0.0
    %1647 = vmatpush1.xpose.msra.mxu0 0.0
    %1648 = vmatprep.subr.mxu0 0.0
    %1649 = vmatpush1.xpose.msra.mxu0 0.0
    %1650 = vmatprep.subr.mxu0 0.0
    %1651 = vmatpush1.xpose.msra.mxu0 0.0
    %1652 = vmatprep.subr.mxu0 0.0
    %1653 = vmatpush1.xpose.msra.mxu0 0.0
    %1654 = vmatprep.subr.mxu0 0.0
    %1655 = vmatpush1.xpose.msra.mxu0 0.0
    %1656 = vmatprep.subr.mxu0 0.0
    %1657 = vmatpush1.xpose.msra.mxu0 0.0
    %1658 = vmatprep.mubr.f32.mxu0 0.0
    %1659 = vmatmul.mubr.f32.gmra.mrb[0].mxu0 %v1590
    %v1660 = vpop.f32.mrb[0].mxu0
    %v1661 = vadd.f32 0.0, %v1660
    %v1662 = vpop.f32.mrb[0].mxu0
    %1663 = vdwg.mxu0
    %1664 = vrot.lane.b32.xlu0 %v182, 104
    %v1665 = vpop.permute.xlu0 %1664
    %1666 = vrot.lane.b32.xlu0 %v266, 104
    %v1667 = vpop.permute.xlu0 %1666
    %v1668 = vsel %vm355, %v1665, 0
    %v1670 = vsel %vm355, %v1667, 0
    %1672 = vmatprep.subr.mxu0 0.0
    %1673 = vmatpush1.xpose.msra.mxu0 %v1670
    %1674 = vmatprep.subr.mxu0 0.0
    %1675 = vmatpush1.xpose.msra.mxu0 0.0
    %1676 = vmatprep.subr.mxu0 0.0
    %1677 = vmatpush1.xpose.msra.mxu0 0.0
    %1678 = vmatprep.subr.mxu0 0.0
    %1679 = vmatpush1.xpose.msra.mxu0 0.0
    %1680 = vmatprep.subr.mxu0 0.0
    %1681 = vmatpush1.xpose.msra.mxu0 0.0
    %1682 = vmatprep.subr.mxu0 0.0
    %1683 = vmatpush1.xpose.msra.mxu0 0.0
    %1684 = vmatprep.subr.mxu0 0.0
    %1685 = vmatpush1.xpose.msra.mxu0 0.0
    %1686 = vmatprep.subr.mxu0 0.0
    %1687 = vmatpush1.xpose.msra.mxu0 0.0
    %1688 = vmatprep.subr.mxu0 0.0
    %1689 = vmatpush1.xpose.msra.mxu0 0.0
    %1690 = vmatprep.subr.mxu0 0.0
    %1691 = vmatpush1.xpose.msra.mxu0 0.0
    %1692 = vmatprep.subr.mxu0 0.0
    %1693 = vmatpush1.xpose.msra.mxu0 0.0
    %1694 = vmatprep.subr.mxu0 0.0
    %1695 = vmatpush1.xpose.msra.mxu0 0.0
    %1696 = vmatprep.subr.mxu0 0.0
    %1697 = vmatpush1.xpose.msra.mxu0 0.0
    %1698 = vmatprep.subr.mxu0 0.0
    %1699 = vmatpush1.xpose.msra.mxu0 0.0
    %1700 = vmatprep.subr.mxu0 0.0
    %1701 = vmatpush1.xpose.msra.mxu0 0.0
    %1702 = vmatprep.subr.mxu0 0.0
    %1703 = vmatpush1.xpose.msra.mxu0 0.0
    %1704 = vmatprep.subr.mxu0 0.0
    %1705 = vmatpush1.xpose.msra.mxu0 0.0
    %1706 = vmatprep.subr.mxu0 0.0
    %1707 = vmatpush1.xpose.msra.mxu0 0.0
    %1708 = vmatprep.subr.mxu0 0.0
    %1709 = vmatpush1.xpose.msra.mxu0 0.0
    %1710 = vmatprep.subr.mxu0 0.0
    %1711 = vmatpush1.xpose.msra.mxu0 0.0
    %1712 = vmatprep.subr.mxu0 0.0
    %1713 = vmatpush1.xpose.msra.mxu0 0.0
    %1714 = vmatprep.subr.mxu0 0.0
    %1715 = vmatpush1.xpose.msra.mxu0 0.0
    %1716 = vmatprep.subr.mxu0 0.0
    %1717 = vmatpush1.xpose.msra.mxu0 0.0
    %1718 = vmatprep.subr.mxu0 0.0
    %1719 = vmatpush1.xpose.msra.mxu0 0.0
    %1720 = vmatprep.subr.mxu0 0.0
    %1721 = vmatpush1.xpose.msra.mxu0 0.0
    %1722 = vmatprep.subr.mxu0 0.0
    %1723 = vmatpush1.xpose.msra.mxu0 0.0
    %1724 = vmatprep.subr.mxu0 0.0
    %1725 = vmatpush1.xpose.msra.mxu0 0.0
    %1726 = vmatprep.subr.mxu0 0.0
    %1727 = vmatpush1.xpose.msra.mxu0 0.0
    %1728 = vmatprep.subr.mxu0 0.0
    %1729 = vmatpush1.xpose.msra.mxu0 0.0
    %1730 = vmatprep.subr.mxu0 0.0
    %1731 = vmatpush1.xpose.msra.mxu0 0.0
    %1732 = vmatprep.subr.mxu0 0.0
    %1733 = vmatpush1.xpose.msra.mxu0 0.0
    %1734 = vmatprep.subr.mxu0 0.0
    %1735 = vmatpush1.xpose.msra.mxu0 0.0
    %1736 = vmatprep.mubr.f32.mxu0 0.0
    %1737 = vmatmul.mubr.f32.gmra.mrb[0].mxu0 %v1668
    %v1738 = vpop.f32.mrb[0].mxu0
    %v1739 = vadd.f32 0.0, %v1738
    %v1740 = vpop.f32.mrb[0].mxu0
    %1741 = vdwg.mxu0
    %v1742 = vsel %vm355, %v1661, -inf
    %1743 = vmax.xlane.f32.xlu0 %v1742
    %v1744 = vpop.xlane.xlu0 %1743
    %v1745 = vsel %vm355, %v1739, -inf
    %1746 = vmax.xlane.f32.xlu0 %v1745
    %v1747 = vpop.xlane.xlu0 %1746
    %v1748 = vsub.f32 %v1661, %v1744
    %v1749 = vsub.f32 %v1739, %v1747
    %v1750 = vmul.f32 %v1748, 1.442695
    %v1751 = vpow.pop %v1750
    %v1752 = vmul.f32 %v1749, 1.442695
    %v1753 = vpow.pop %v1752
    %v1754 = vsel %vm355, %v1751, 0.0
    %1755 = vadd.xlane.f32.xlu0 %v1754
    %v1756 = vpop.xlane.xlu0 %1755
    %v1757 = vsel %vm355, %v1753, 0.0
    %1758 = vadd.xlane.f32.xlu0 %v1757
    %v1759 = vpop.xlane.xlu0 %1758
    %v1760 = vrcp.pop %v1756
    %v1761 = vrcp.pop %v1759
    %v1762 = vmul.f32 %v1751, %v1760
    %v1763 = vmul.f32 %v1753, %v1761
    %1764 = vrot.lane.b32.xlu0 %v347, 104
    %v1765 = vpop.permute.xlu0 %1764
    %v1768 = vsel %vm355, %v1762, 0
    %1770 = vmatprep.subr.mxu0 0.0
    %1771 = vmatpush1.msra.mxu0 %v1765
    %1772 = vmatprep.subr.mxu0 0.0
    %1773 = vmatpush1.msra.mxu0 0.0
    %1774 = vmatprep.subr.mxu0 0.0
    %1775 = vmatpush1.msra.mxu0 0.0
    %1776 = vmatprep.subr.mxu0 0.0
    %1777 = vmatpush1.msra.mxu0 0.0
    %1778 = vmatprep.subr.mxu0 0.0
    %1779 = vmatpush1.msra.mxu0 0.0
    %1780 = vmatprep.subr.mxu0 0.0
    %1781 = vmatpush1.msra.mxu0 0.0
    %1782 = vmatprep.subr.mxu0 0.0
    %1783 = vmatpush1.msra.mxu0 0.0
    %1784 = vmatprep.subr.mxu0 0.0
    %1785 = vmatpush1.msra.mxu0 0.0
    %1786 = vmatprep.subr.mxu0 0.0
    %1787 = vmatpush1.msra.mxu0 0.0
    %1788 = vmatprep.subr.mxu0 0.0
    %1789 = vmatpush1.msra.mxu0 0.0
    %1790 = vmatprep.subr.mxu0 0.0
    %1791 = vmatpush1.msra.mxu0 0.0
    %1792 = vmatprep.subr.mxu0 0.0
    %1793 = vmatpush1.msra.mxu0 0.0
    %1794 = vmatprep.subr.mxu0 0.0
    %1795 = vmatpush1.msra.mxu0 0.0
    %1796 = vmatprep.subr.mxu0 0.0
    %1797 = vmatpush1.msra.mxu0 0.0
    %1798 = vmatprep.subr.mxu0 0.0
    %1799 = vmatpush1.msra.mxu0 0.0
    %1800 = vmatprep.subr.mxu0 0.0
    %1801 = vmatpush1.msra.mxu0 0.0
    %1802 = vmatprep.subr.mxu0 0.0
    %1803 = vmatpush1.msra.mxu0 0.0
    %1804 = vmatprep.subr.mxu0 0.0
    %1805 = vmatpush1.msra.mxu0 0.0
    %1806 = vmatprep.subr.mxu0 0.0
    %1807 = vmatpush1.msra.mxu0 0.0
    %1808 = vmatprep.subr.mxu0 0.0
    %1809 = vmatpush1.msra.mxu0 0.0
    %1810 = vmatprep.subr.mxu0 0.0
    %1811 = vmatpush1.msra.mxu0 0.0
    %1812 = vmatprep.subr.mxu0 0.0
    %1813 = vmatpush1.msra.mxu0 0.0
    %1814 = vmatprep.subr.mxu0 0.0
    %1815 = vmatpush1.msra.mxu0 0.0
    %1816 = vmatprep.subr.mxu0 0.0
    %1817 = vmatpush1.msra.mxu0 0.0
    %1818 = vmatprep.subr.mxu0 0.0
    %1819 = vmatpush1.msra.mxu0 0.0
    %1820 = vmatprep.subr.mxu0 0.0
    %1821 = vmatpush1.msra.mxu0 0.0
    %1822 = vmatprep.subr.mxu0 0.0
    %1823 = vmatpush1.msra.mxu0 0.0
    %1824 = vmatprep.subr.mxu0 0.0
    %1825 = vmatpush1.msra.mxu0 0.0
    %1826 = vmatprep.subr.mxu0 0.0
    %1827 = vmatpush1.msra.mxu0 0.0
    %1828 = vmatprep.subr.mxu0 0.0
    %1829 = vmatpush1.msra.mxu0 0.0
    %1830 = vmatprep.subr.mxu0 0.0
    %1831 = vmatpush1.msra.mxu0 0.0
    %1832 = vmatprep.subr.mxu0 0.0
    %1833 = vmatpush1.msra.mxu0 0.0
    %1834 = vmatprep.mubr.f32.mxu0 0.0
    %1835 = vmatmul.mubr.f32.gmra.mrb[0].mxu0 %v1768
    %v1836 = vpop.f32.mrb[0].mxu0
    %v1837 = vadd.f32 0.0, %v1836
    %v1838 = vpop.f32.mrb[0].mxu0
    %1839 = vdwg.mxu0
    %1840 = vrot.lane.b32.xlu0 %v352, 104
    %v1841 = vpop.permute.xlu0 %1840
    %v1844 = vsel %vm355, %v1763, 0
    %1846 = vmatprep.subr.mxu0 0.0
    %1847 = vmatpush1.msra.mxu0 %v1841
    %1848 = vmatprep.subr.mxu0 0.0
    %1849 = vmatpush1.msra.mxu0 0.0
    %1850 = vmatprep.subr.mxu0 0.0
    %1851 = vmatpush1.msra.mxu0 0.0
    %1852 = vmatprep.subr.mxu0 0.0
    %1853 = vmatpush1.msra.mxu0 0.0
    %1854 = vmatprep.subr.mxu0 0.0
    %1855 = vmatpush1.msra.mxu0 0.0
    %1856 = vmatprep.subr.mxu0 0.0
    %1857 = vmatpush1.msra.mxu0 0.0
    %1858 = vmatprep.subr.mxu0 0.0
    %1859 = vmatpush1.msra.mxu0 0.0
    %1860 = vmatprep.subr.mxu0 0.0
    %1861 = vmatpush1.msra.mxu0 0.0
    %1862 = vmatprep.subr.mxu0 0.0
    %1863 = vmatpush1.msra.mxu0 0.0
    %1864 = vmatprep.subr.mxu0 0.0
    %1865 = vmatpush1.msra.mxu0 0.0
    %1866 = vmatprep.subr.mxu0 0.0
    %1867 = vmatpush1.msra.mxu0 0.0
    %1868 = vmatprep.subr.mxu0 0.0
    %1869 = vmatpush1.msra.mxu0 0.0
    %1870 = vmatprep.subr.mxu0 0.0
    %1871 = vmatpush1.msra.mxu0 0.0
    %1872 = vmatprep.subr.mxu0 0.0
    %1873 = vmatpush1.msra.mxu0 0.0
    %1874 = vmatprep.subr.mxu0 0.0
    %1875 = vmatpush1.msra.mxu0 0.0
    %1876 = vmatprep.subr.mxu0 0.0
    %1877 = vmatpush1.msra.mxu0 0.0
    %1878 = vmatprep.subr.mxu0 0.0
    %1879 = vmatpush1.msra.mxu0 0.0
    %1880 = vmatprep.subr.mxu0 0.0
    %1881 = vmatpush1.msra.mxu0 0.0
    %1882 = vmatprep.subr.mxu0 0.0
    %1883 = vmatpush1.msra.mxu0 0.0
    %1884 = vmatprep.subr.mxu0 0.0
    %1885 = vmatpush1.msra.mxu0 0.0
    %1886 = vmatprep.subr.mxu0 0.0
    %1887 = vmatpush1.msra.mxu0 0.0
    %1888 = vmatprep.subr.mxu0 0.0
    %1889 = vmatpush1.msra.mxu0 0.0
    %1890 = vmatprep.subr.mxu0 0.0
    %1891 = vmatpush1.msra.mxu0 0.0
    %1892 = vmatprep.subr.mxu0 0.0
    %1893 = vmatpush1.msra.mxu0 0.0
    %1894 = vmatprep.subr.mxu0 0.0
    %1895 = vmatpush1.msra.mxu0 0.0
    %1896 = vmatprep.subr.mxu0 0.0
    %1897 = vmatpush1.msra.mxu0 0.0
    %1898 = vmatprep.subr.mxu0 0.0
    %1899 = vmatpush1.msra.mxu0 0.0
    %1900 = vmatprep.subr.mxu0 0.0
    %1901 = vmatpush1.msra.mxu0 0.0
    %1902 = vmatprep.subr.mxu0 0.0
    %1903 = vmatpush1.msra.mxu0 0.0
    %1904 = vmatprep.subr.mxu0 0.0
    %1905 = vmatpush1.msra.mxu0 0.0
    %1906 = vmatprep.subr.mxu0 0.0
    %1907 = vmatpush1.msra.mxu0 0.0
    %1908 = vmatprep.subr.mxu0 0.0
    %1909 = vmatpush1.msra.mxu0 0.0
    %1910 = vmatprep.mubr.f32.mxu0 0.0
    %1911 = vmatmul.mubr.f32.gmra.mrb[0].mxu0 %v1844
    %v1912 = vpop.f32.mrb[0].mxu0
    %v1913 = vadd.f32 0.0, %v1912
    %v1914 = vpop.f32.mrb[0].mxu0
    %1915 = vdwg.mxu0
    %v1916 = vld [vmem:[#allocation5 + $0x18] sm:$0xff]
    %v1918 = vsel %vm355, %v1837, 0
    %v1921 = vsel %vm355, %v1913, 0
    %1923 = vmatprep.subr.mxu0 0.0
    %1924 = vmatpush1.msra.mxu0 %v1916
    %1925 = vmatprep.subr.mxu0 0.0
    %1926 = vmatpush1.msra.mxu0 0.0
    %1927 = vmatprep.subr.mxu0 0.0
    %1928 = vmatpush1.msra.mxu0 0.0
    %1929 = vmatprep.subr.mxu0 0.0
    %1930 = vmatpush1.msra.mxu0 0.0
    %1931 = vmatprep.subr.mxu0 0.0
    %1932 = vmatpush1.msra.mxu0 0.0
    %1933 = vmatprep.subr.mxu0 0.0
    %1934 = vmatpush1.msra.mxu0 0.0
    %1935 = vmatprep.subr.mxu0 0.0
    %1936 = vmatpush1.msra.mxu0 0.0
    %1937 = vmatprep.subr.mxu0 0.0
    %1938 = vmatpush1.msra.mxu0 0.0
    %1939 = vmatprep.subr.mxu0 0.0
    %1940 = vmatpush1.msra.mxu0 0.0
    %1941 = vmatprep.subr.mxu0 0.0
    %1942 = vmatpush1.msra.mxu0 0.0
    %1943 = vmatprep.subr.mxu0 0.0
    %1944 = vmatpush1.msra.mxu0 0.0
    %1945 = vmatprep.subr.mxu0 0.0
    %1946 = vmatpush1.msra.mxu0 0.0
    %1947 = vmatprep.subr.mxu0 0.0
    %1948 = vmatpush1.msra.mxu0 0.0
    %1949 = vmatprep.subr.mxu0 0.0
    %1950 = vmatpush1.msra.mxu0 0.0
    %1951 = vmatprep.subr.mxu0 0.0
    %1952 = vmatpush1.msra.mxu0 0.0
    %1953 = vmatprep.subr.mxu0 0.0
    %1954 = vmatpush1.msra.mxu0 0.0
    %1955 = vmatprep.subr.mxu0 0.0
    %1956 = vmatpush1.msra.mxu0 0.0
    %1957 = vmatprep.subr.mxu0 0.0
    %1958 = vmatpush1.msra.mxu0 0.0
    %1959 = vmatprep.subr.mxu0 0.0
    %1960 = vmatpush1.msra.mxu0 0.0
    %1961 = vmatprep.subr.mxu0 0.0
    %1962 = vmatpush1.msra.mxu0 0.0
    %1963 = vmatprep.subr.mxu0 0.0
    %1964 = vmatpush1.msra.mxu0 0.0
    %1965 = vmatprep.subr.mxu0 0.0
    %1966 = vmatpush1.msra.mxu0 0.0
    %1967 = vmatprep.subr.mxu0 0.0
    %1968 = vmatpush1.msra.mxu0 0.0
    %1969 = vmatprep.subr.mxu0 0.0
    %1970 = vmatpush1.msra.mxu0 0.0
    %1971 = vmatprep.subr.mxu0 0.0
    %1972 = vmatpush1.msra.mxu0 0.0
    %1973 = vmatprep.subr.mxu0 0.0
    %1974 = vmatpush1.msra.mxu0 0.0
    %1975 = vmatprep.subr.mxu0 0.0
    %1976 = vmatpush1.msra.mxu0 0.0
    %1977 = vmatprep.subr.mxu0 0.0
    %1978 = vmatpush1.msra.mxu0 0.0
    %1979 = vmatprep.subr.mxu0 0.0
    %1980 = vmatpush1.msra.mxu0 0.0
    %1981 = vmatprep.subr.mxu0 0.0
    %1982 = vmatpush1.msra.mxu0 0.0
    %1983 = vmatprep.subr.mxu0 0.0
    %1984 = vmatpush1.msra.mxu0 0.0
    %1985 = vmatprep.subr.mxu0 0.0
    %1986 = vmatpush1.msra.mxu0 0.0
    %1987 = vmatprep.mubr.f32.mxu0 0.0
    %1988 = vmatmul.mubr.f32.gmra.mrb[0].mxu0 %v1918
    %v1989 = vpop.f32.mrb[0].mxu0
    %v1990 = vadd.f32 0.0, %v1989
    %v1991 = vpop.f32.mrb[0].mxu0
    %1992 = vmatprep.mubr.f32.mxu0 0.0
    %1993 = vmatmul.mubr.f32.gmra.mrb[0].mxu0 %v1921
    %v1994 = vpop.f32.mrb[0].mxu0
    %v1995 = vadd.f32 0.0, %v1994
    %v1996 = vpop.f32.mrb[0].mxu0
    %1997 = vdwg.mxu0
    %v1998 = vadd.f32 %v1584, %v1990
    %v1999 = vadd.f32 %v1585, %v1995
    %v2000 = vld [vmem:[%s8] sm:$0x1]
    %v2002 = vlaneseq
    %v2003 = vshrl.u32 %v2002, 7
    %v2004 = vsub.s32 0, %v2003
    %v2005 = vrot.slane %v2000, %v2004
    %v2007 = vadd.f32 %v1998, %v2005
    %v2008 = vadd.f32 %v1999, %v2005
    %v2009 = vadd.f32 %v86, %v2007
    %v2010 = vadd.f32 %v87, %v2008
    %v2011 = vld [vmem:[#allocation7] sm:$0xff]
    %v2012 = vld [vmem:[#allocation7 + $0x8] sm:$0xff]
    %v2013 = vld [vmem:[#allocation7 + $0x10] sm:$0xff]
    %v2014 = vld [vmem:[#allocation7 + $0x18] sm:$0xff]
    %v2015 = vld [vmem:[%s10] sm:$0x1]
    %v2017 = vlaneseq
    %v2018 = vshrl.u32 %v2017, 7
    %v2019 = vsub.s32 0, %v2018
    %v2020 = vrot.slane %v2015, %v2019
    %v2023 = vsel %vm99, %v2009, 0
    %v2026 = vsel %vm99, %v2010, 0
    %2028 = vmatprep.subr.mxu0 0.0
    %2029 = vmatpush1.msra.mxu0 %v2011
    %2030 = vmatprep.subr.mxu0 0.0
    %2031 = vmatpush1.msra.mxu0 %v2012
    %2032 = vmatprep.subr.mxu0 0.0
    %2033 = vmatpush1.msra.mxu0 %v2013
    %2034 = vmatprep.subr.mxu0 0.0
    %2035 = vmatpush1.msra.mxu0 %v2014
    %2036 = vmatprep.subr.mxu0 0.0
    %2037 = vmatpush1.msra.mxu0 0.0
    %2038 = vmatprep.subr.mxu0 0.0
    %2039 = vmatpush1.msra.mxu0 0.0
    %2040 = vmatprep.subr.mxu0 0.0
    %2041 = vmatpush1.msra.mxu0 0.0
    %2042 = vmatprep.subr.mxu0 0.0
    %2043 = vmatpush1.msra.mxu0 0.0
    %2044 = vmatprep.subr.mxu0 0.0
    %2045 = vmatpush1.msra.mxu0 0.0
    %2046 = vmatprep.subr.mxu0 0.0
    %2047 = vmatpush1.msra.mxu0 0.0
    %2048 = vmatprep.subr.mxu0 0.0
    %2049 = vmatpush1.msra.mxu0 0.0
    %2050 = vmatprep.subr.mxu0 0.0
    %2051 = vmatpush1.msra.mxu0 0.0
    %2052 = vmatprep.subr.mxu0 0.0
    %2053 = vmatpush1.msra.mxu0 0.0
    %2054 = vmatprep.subr.mxu0 0.0
    %2055 = vmatpush1.msra.mxu0 0.0
    %2056 = vmatprep.subr.mxu0 0.0
    %2057 = vmatpush1.msra.mxu0 0.0
    %2058 = vmatprep.subr.mxu0 0.0
    %2059 = vmatpush1.msra.mxu0 0.0
    %2060 = vmatprep.subr.mxu0 0.0
    %2061 = vmatpush1.msra.mxu0 0.0
    %2062 = vmatprep.subr.mxu0 0.0
    %2063 = vmatpush1.msra.mxu0 0.0
    %2064 = vmatprep.subr.mxu0 0.0
    %2065 = vmatpush1.msra.mxu0 0.0
    %2066 = vmatprep.subr.mxu0 0.0
    %2067 = vmatpush1.msra.mxu0 0.0
    %2068 = vmatprep.subr.mxu0 0.0
    %2069 = vmatpush1.msra.mxu0 0.0
    %2070 = vmatprep.subr.mxu0 0.0
    %2071 = vmatpush1.msra.mxu0 0.0
    %2072 = vmatprep.subr.mxu0 0.0
    %2073 = vmatpush1.msra.mxu0 0.0
    %2074 = vmatprep.subr.mxu0 0.0
    %2075 = vmatpush1.msra.mxu0 0.0
    %2076 = vmatprep.subr.mxu0 0.0
    %2077 = vmatpush1.msra.mxu0 0.0
    %2078 = vmatprep.subr.mxu0 0.0
    %2079 = vmatpush1.msra.mxu0 0.0
    %2080 = vmatprep.subr.mxu0 0.0
    %2081 = vmatpush1.msra.mxu0 0.0
    %2082 = vmatprep.subr.mxu0 0.0
    %2083 = vmatpush1.msra.mxu0 0.0
    %2084 = vmatprep.subr.mxu0 0.0
    %2085 = vmatpush1.msra.mxu0 0.0
    %2086 = vmatprep.subr.mxu0 0.0
    %2087 = vmatpush1.msra.mxu0 0.0
    %2088 = vmatprep.subr.mxu0 0.0
    %2089 = vmatpush1.msra.mxu0 0.0
    %2090 = vmatprep.subr.mxu0 0.0
    %2091 = vmatpush1.msra.mxu0 0.0
    %2092 = vmatprep.mubr.f32.mxu0 0.0
    %2093 = vmatmul.mubr.f32.gmra.mrb[0].mxu0 %v2023
    %v2094 = vpop.f32.mrb[0].mxu0
    %v2095 = vadd.f32 %v2020, %v2094
    %v2096 = vpop.f32.mrb[0].mxu0
    %2097 = vmatprep.mubr.f32.mxu0 0.0
    %2098 = vmatmul.mubr.f32.gmra.mrb[0].mxu0 %v2026
    %v2099 = vpop.f32.mrb[0].mxu0
    %v2100 = vadd.f32 %v2020, %v2099
    %v2101 = vpop.f32.mrb[0].mxu0
    %2102 = vdwg.mxu0
    %v2103 = vmax.f32 %v2095, 0.0
    %v2104 = vmax.f32 %v2100, 0.0
    %v2105 = vld [vmem:[%s11] sm:$0xff]
    %v2106 = vld [vmem:[%s11 + $0x8] sm:$0xff]
    %v2107 = vld [vmem:[%s11 + $0x10] sm:$0xff]
    %v2108 = vld [vmem:[%s11 + $0x18] sm:$0xff]
    %v2109 = vld [vmem:[%s11 + $0x20] sm:$0xff]
    %v2110 = vld [vmem:[%s11 + $0x28] sm:$0xff]
    %v2111 = vld [vmem:[%s11 + $0x30] sm:$0xff]
    %v2112 = vld [vmem:[%s11 + $0x38] sm:$0xff]
    %v2113 = vld [vmem:[%s12] sm:$0x1]
    %v2115 = vlaneseq
    %v2116 = vshrl.u32 %v2115, 7
    %v2117 = vsub.s32 0, %v2116
    %v2118 = vrot.slane %v2113, %v2117
    %vm2120 = vcmask 523264
    %v2122 = vsel %vm2120, %v2103, 0
    %v2125 = vsel %vm2120, %v2104, 0
    %2127 = vmatprep.subr.mxu0 0.0
    %2128 = vmatpush1.msra.mxu0 %v2105
    %2129 = vmatprep.subr.mxu0 0.0
    %2130 = vmatpush1.msra.mxu0 %v2106
    %2131 = vmatprep.subr.mxu0 0.0
    %2132 = vmatpush1.msra.mxu0 %v2107
    %2133 = vmatprep.subr.mxu0 0.0
    %2134 = vmatpush1.msra.mxu0 %v2108
    %2135 = vmatprep.subr.mxu0 0.0
    %2136 = vmatpush1.msra.mxu0 %v2109
    %2137 = vmatprep.subr.mxu0 0.0
    %2138 = vmatpush1.msra.mxu0 %v2110
    %2139 = vmatprep.subr.mxu0 0.0
    %2140 = vmatpush1.msra.mxu0 %v2111
    %2141 = vmatprep.subr.mxu0 0.0
    %2142 = vmatpush1.msra.mxu0 %v2112
    %2143 = vmatprep.subr.mxu0 0.0
    %2144 = vmatpush1.msra.mxu0 0.0
    %2145 = vmatprep.subr.mxu0 0.0
    %2146 = vmatpush1.msra.mxu0 0.0
    %2147 = vmatprep.subr.mxu0 0.0
    %2148 = vmatpush1.msra.mxu0 0.0
    %2149 = vmatprep.subr.mxu0 0.0
    %2150 = vmatpush1.msra.mxu0 0.0
    %2151 = vmatprep.subr.mxu0 0.0
    %2152 = vmatpush1.msra.mxu0 0.0
    %2153 = vmatprep.subr.mxu0 0.0
    %2154 = vmatpush1.msra.mxu0 0.0
    %2155 = vmatprep.subr.mxu0 0.0
    %2156 = vmatpush1.msra.mxu0 0.0
    %2157 = vmatprep.subr.mxu0 0.0
    %2158 = vmatpush1.msra.mxu0 0.0
    %2159 = vmatprep.subr.mxu0 0.0
    %2160 = vmatpush1.msra.mxu0 0.0
    %2161 = vmatprep.subr.mxu0 0.0
    %2162 = vmatpush1.msra.mxu0 0.0
    %2163 = vmatprep.subr.mxu0 0.0
    %2164 = vmatpush1.msra.mxu0 0.0
    %2165 = vmatprep.subr.mxu0 0.0
    %2166 = vmatpush1.msra.mxu0 0.0
    %2167 = vmatprep.subr.mxu0 0.0
    %2168 = vmatpush1.msra.mxu0 0.0
    %2169 = vmatprep.subr.mxu0 0.0
    %2170 = vmatpush1.msra.mxu0 0.0
    %2171 = vmatprep.subr.mxu0 0.0
    %2172 = vmatpush1.msra.mxu0 0.0
    %2173 = vmatprep.subr.mxu0 0.0
    %2174 = vmatpush1.msra.mxu0 0.0
    %2175 = vmatprep.subr.mxu0 0.0
    %2176 = vmatpush1.msra.mxu0 0.0
    %2177 = vmatprep.subr.mxu0 0.0
    %2178 = vmatpush1.msra.mxu0 0.0
    %2179 = vmatprep.subr.mxu0 0.0
    %2180 = vmatpush1.msra.mxu0 0.0
    %2181 = vmatprep.subr.mxu0 0.0
    %2182 = vmatpush1.msra.mxu0 0.0
    %2183 = vmatprep.subr.mxu0 0.0
    %2184 = vmatpush1.msra.mxu0 0.0
    %2185 = vmatprep.subr.mxu0 0.0
    %2186 = vmatpush1.msra.mxu0 0.0
    %2187 = vmatprep.subr.mxu0 0.0
    %2188 = vmatpush1.msra.mxu0 0.0
    %2189 = vmatprep.subr.mxu0 0.0
    %2190 = vmatpush1.msra.mxu0 0.0
    %2191 = vmatprep.mubr.f32.mxu0 0.0
    %2192 = vmatmul.mubr.f32.gmra.mrb[0].mxu0 %v2122
    %v2193 = vpop.f32.mrb[0].mxu0
    %v2194 = vadd.f32 %v2118, %v2193
    %v2195 = vpop.f32.mrb[0].mxu0
    %2196 = vmatprep.mubr.f32.mxu0 0.0
    %2197 = vmatmul.mubr.f32.gmra.mrb[0].mxu0 %v2125
    %v2198 = vpop.f32.mrb[0].mxu0
    %v2199 = vadd.f32 %v2118, %v2198
    %v2200 = vpop.f32.mrb[0].mxu0
    %2201 = vdwg.mxu0
    %v2202 = vadd.f32 %v2009, %v2194
    %v2203 = vadd.f32 %v2010, %v2199
    %2204 = vst.msk [vmem:[#allocation8] sm:$0xff] %vm99, %v2202
    %2205 = vst.msk [vmem:[#allocation8 + $0x8] sm:$0xff] %vm99, %v2203
    // Predicated region
    $region66: #{tpu_custom_call.1} parent=1 // pred_check
      _
    $region67: #{tpu_custom_call.1} parent=1 // pred_check_branch
      %2207 = sbr.rel (0) target = $region69
    $region68: #{tpu_custom_call.1} parent=1 // pred_region
      %s2209 = ssub.s32 256, 256
      %2210 = vsyncadd [#allocation4], %s2209
      %s2211 = sshll.u32 [#allocation8], 4
      %s2212 = int_to_ptr.vmem [resolvable:$true] %s2211
      %2217 = dma.vmem_to_hbm [thread:$0]  %s2212, 256, %s13, [#allocation4], 128, 128, 8
    $region69: #{tpu_custom_call.1} parent=1 // pred_fallthru
      _
    // Predicated region
    $region70: #{tpu_custom_call.1} parent=1 // pred_check
      _
    $region71: #{tpu_custom_call.1} parent=1 // pred_check_branch
      %2219 = sbr.rel (0) target = $region73
    $region72: #{tpu_custom_call.1} parent=1 // pred_region
      %2220 = dma.done [#allocation4], 256
    $region73: #{tpu_custom_call.1} parent=1 // pred_fallthru
      _
    %2221 = vsyncpa [#allocation3], 1
    %2222 = vsyncpa [#allocation6], 1
    %2223 = vsyncpa [#allocation4], 1

</llo_original>
